<compile_context>
chip_gen: v7x
topology: tpu7x:2x2x1
jax: 0.10.0
libtpu: 0.0.40
codegen_flags: <defaults>
</compile_context>

<pallas_src>
import functools

import jax
import jax.numpy as jnp
from jax.experimental import pallas as pl
from jax.experimental.pallas import tpu as pltpu

BN_EPS = 1e-5      # HPS['batchnorm_kwargs']['eps']
COS_EPS = 1e-8     # F.cosine_similarity eps

_VMEM_FLOOR = 32 * 1024 * 1024
_VMEM_CAP = 48 * 1024 * 1024   # stays under v7x's 64 MiB physical VMEM


# ------------------------------ tiling helpers -------------------------------

def _tile_and_pad(dim, target, multiple):
    """Pick (tile, padded_dim) for one axis.

    If dim <= target the whole dim is a single block (always legal).
    Otherwise prefer the largest exact divisor of dim that is a multiple of
    `multiple`; if none exists, fall back to a bounded tile of
    (target // multiple) * multiple and zero-pad the dim -- never return the
    full dim (avoids VMEM blow-ups for non-friendly shapes)."""
    if dim <= target:
        return dim, dim
    best = None
    t = multiple
    while t <= target:
        if dim % t == 0:
            best = t
        t += multiple
    if best is not None:
        return best, dim
    tile = max((target // multiple) * multiple, multiple)
    padded = ((dim + tile - 1) // tile) * tile
    return tile, padded


def _vmem_limit(bytes_needed):
    return int(min(max(2 * bytes_needed, _VMEM_FLOOR), _VMEM_CAP))


# ----------------------------- Pallas kernels --------------------------------

def _linear_kernel(x_ref, w_ref, b_ref, o_ref, acc_ref):
    # y = x @ W + b; one (tm, tn) output tile; K (reduction) is the last grid axis.
    k = pl.program_id(2)

    @pl.when(k == 0)
    def _init():
        acc_ref[...] = jnp.zeros_like(acc_ref)

    acc_ref[...] += jnp.dot(x_ref[...], w_ref[...],
                            preferred_element_type=jnp.float32)

    @pl.when(k == pl.num_programs(2) - 1)
    def _finalize():
        # bias only in the epilogue (keeps the K loop MXU-only); bf16 output.
        o_ref[...] = (acc_ref[...] + b_ref[...]).astype(o_ref.dtype)


def _mlp_kernel(bpv, x_ref, w1_ref, b1_ref, g_ref, beta_ref, w2_ref, b2_ref,
                o_ref, acc_ref):
    # Fused Linear -> BatchNorm1d(train-mode batch stats) -> ReLU -> Linear.
    # Both views are merged into one 2B-row pass (weights streamed once, full
    # MXU row occupancy); BN stats stay per view via static row slices.
    # grid = (hidden-tile,): W1 columns / W2 rows tiled, reduced into acc_ref.
    h_idx = pl.program_id(0)

    @pl.when(h_idx == 0)
    def _init():
        acc_ref[...] = jnp.zeros_like(acc_ref)

    x = x_ref[...]                                                    # (2B, Fin) bf16
    h = jnp.dot(x, w1_ref[...], preferred_element_type=jnp.float32) + b1_ref[...]

    # per-view BN stats in ONE pass (sum & sum-of-squares), biased var (PyTorch BN)
    def _stats(hv):
        m = jnp.mean(hv, axis=0, keepdims=True)
        ms = jnp.mean(hv * hv, axis=0, keepdims=True)
        var = jnp.maximum(ms - m * m, 0.0)
        return m, jax.lax.rsqrt(var + BN_EPS)

    m1, r1 = _stats(h[:bpv])
    m2, r2 = _stats(h[bpv:])
    row = jax.lax.broadcasted_iota(jnp.int32, (h.shape[0], 1), 0)
    in_view2 = row >= bpv
    mean = jnp.where(in_view2, m2, m1)
    rstd = jnp.where(in_view2, r2, r1)

    hn = (h - mean) * rstd * g_ref[...] + beta_ref[...]
    hr = jnp.maximum(hn, 0.0)
    acc_ref[...] += jnp.dot(hr.astype(jnp.bfloat16), w2_ref[...],
                            preferred_element_type=jnp.float32)

    @pl.when(h_idx == pl.num_programs(0) - 1)
    def _finalize():
        o_ref[...] = (acc_ref[...] + b2_ref[...]).astype(o_ref.dtype)


def _byol_loss_kernel(p_ref, z_ref, o_ref):
    # L = -0.5*mean_b cos(p1,z2) - 0.5*mean_b cos(p2,z1); z views swapped
    # IN-KERNEL (no materialized jnp.stack in the wrapper).
    p = p_ref[...]                                                    # (2, B, D) f32
    z = z_ref[...]
    B = p.shape[1]

    def _cos_sum(pv, zv):
        dot = jnp.sum(pv * zv, axis=-1, keepdims=True)
        # 1/max(||v||, eps) == min(rsqrt(||v||^2), 1/eps)  (per-norm clamp, PyTorch)
        inv_p = jnp.minimum(jax.lax.rsqrt(jnp.sum(pv * pv, axis=-1, keepdims=True)),
                            1.0 / COS_EPS)
        inv_z = jnp.minimum(jax.lax.rsqrt(jnp.sum(zv * zv, axis=-1, keepdims=True)),
                            1.0 / COS_EPS)
        return jnp.sum(dot * inv_p * inv_z)

    c = _cos_sum(p[0], z[1]) + _cos_sum(p[1], z[0])
    o_ref[...] = jnp.reshape(-0.5 * c / B, (1, 1))


# ----------------------------- Python wrappers --------------------------------

def pallas_linear(x, w, b, *, tile_m=512, tile_n=512, tile_k=1024,
                  out_dtype=jnp.bfloat16):
    """y = x @ W + b, tiled (M,N parallel; K reduction), bf16 MXU / f32 acc."""
    M, K = x.shape
    Kw, N = w.shape
    assert K == Kw
    tm, Mp = _tile_and_pad(M, tile_m, 128)   # bf16 sublane packing / MXU rows
    tn, Np = _tile_and_pad(N, tile_n, 256)   # MXU-native width on v6e/v7x
    tk, Kp = _tile_and_pad(K, tile_k, 256)

    xb = x.astype(jnp.bfloat16)
    wb = w.astype(jnp.bfloat16)
    bb = b.astype(jnp.float32).reshape(1, N)
    if (Mp, Kp) != (M, K):
        xb = jnp.pad(xb, ((0, Mp - M), (0, Kp - K)))
    if (Kp, Np) != (K, N):
        wb = jnp.pad(wb, ((0, Kp - K), (0, Np - N)))
    if Np != N:
        bb = jnp.pad(bb, ((0, 0), (0, Np - N)))

    grid = (Mp // tm, Np // tn, Kp // tk)
    out_itemsize = jnp.dtype(out_dtype).itemsize
    vmem_bytes = (2 * (tm * tk + tk * tn) * 2 + 2 * tn * 4
                  + tm * tn * 4 + 2 * tm * tn * out_itemsize)

    out = pl.pallas_call(
        _linear_kernel,
        out_shape=jax.ShapeDtypeStruct((Mp, Np), out_dtype),
        grid_spec=pltpu.PrefetchScalarGridSpec(
            num_scalar_prefetch=0,
            grid=grid,
            in_specs=[
                pl.BlockSpec((tm, tk), lambda i, j, k: (i, k)),
                pl.BlockSpec((tk, tn), lambda i, j, k: (k, j)),
                pl.BlockSpec((1, tn), lambda i, j, k: (0, j)),
            ],
            out_specs=pl.BlockSpec((tm, tn), lambda i, j, k: (i, j)),
            scratch_shapes=[pltpu.VMEM((tm, tn), jnp.float32)],
        ),
        compiler_params=pltpu.CompilerParams(
            dimension_semantics=("parallel", "parallel", "arbitrary"),
            vmem_limit_bytes=_vmem_limit(vmem_bytes)),
    )(xb, wb, bb)
    if (Mp, Np) != (M, N):
        out = out[:M, :N]
    return out


def pallas_mlp(x, params, batch_per_view, *, hidden_tile=1024):
    """Fused Linear->BN->ReLU->Linear on a merged (2B, Fin) activation stack.

    Both views share one pass (weights streamed once, 2B MXU rows); BN stats
    are computed per view inside the kernel. The hidden axis is tiled
    ("arbitrary") and the second Linear's contribution is reduced into a VMEM
    accumulator; bias b2 is added in the epilogue."""
    w1, b1, g, beta, w2, b2 = params
    M2, Fin = x.shape
    H = w1.shape[1]
    Dout = w2.shape[1]
    assert M2 == 2 * batch_per_view

    th, Hp = _tile_and_pad(H, hidden_tile, 256)
    w1b = w1.astype(jnp.bfloat16)
    b1f = b1.astype(jnp.float32).reshape(1, H)
    gf = g.astype(jnp.float32).reshape(1, H)
    betaf = beta.astype(jnp.float32).reshape(1, H)
    w2b = w2.astype(jnp.bfloat16)
    b2f = b2.astype(jnp.float32).reshape(1, Dout)
    if Hp != H:
        # zero-padded hidden columns are exact no-ops: h_pad=0, gamma/beta=0,
        # W2 rows=0 -> zero contribution to the output.
        pad = Hp - H
        w1b = jnp.pad(w1b, ((0, 0), (0, pad)))
        b1f = jnp.pad(b1f, ((0, 0), (0, pad)))
        gf = jnp.pad(gf, ((0, 0), (0, pad)))
        betaf = jnp.pad(betaf, ((0, 0), (0, pad)))
        w2b = jnp.pad(w2b, ((0, pad), (0, 0)))

    grid = (Hp // th,)
    vmem_bytes = (2 * (M2 * Fin * 2 + Fin * th * 2 + th * Dout * 2
                       + 3 * th * 4 + Dout * 4)
                  + 2 * M2 * Dout * 4 + M2 * Dout * 4)

    return pl.pallas_call(
        functools.partial(_mlp_kernel, batch_per_view),
        out_shape=jax.ShapeDtypeStruct((M2, Dout), jnp.float32),
        grid_spec=pltpu.PrefetchScalarGridSpec(
            num_scalar_prefetch=0,
            grid=grid,
            in_specs=[
                pl.BlockSpec((M2, Fin), lambda h: (0, 0)),     # merged-view acts
                pl.BlockSpec((Fin, th), lambda h: (0, h)),     # W1 column tile
                pl.BlockSpec((1, th), lambda h: (0, h)),       # b1
                pl.BlockSpec((1, th), lambda h: (0, h)),       # BN gamma
                pl.BlockSpec((1, th), lambda h: (0, h)),       # BN beta
                pl.BlockSpec((th, Dout), lambda h: (h, 0)),    # W2 row tile
                pl.BlockSpec((1, Dout), lambda h: (0, 0)),     # b2
            ],
            out_specs=pl.BlockSpec((M2, Dout), lambda h: (0, 0)),
            scratch_shapes=[pltpu.VMEM((M2, Dout), jnp.float32)],
        ),
        compiler_params=pltpu.CompilerParams(
            dimension_semantics=("arbitrary",),
            vmem_limit_bytes=_vmem_limit(vmem_bytes)),
    )(x.astype(jnp.bfloat16), w1b, b1f, gf, betaf, w2b, b2f)


def pallas_byol_loss(p_pair, z_pair):
    V, B, D = p_pair.shape
    out = pl.pallas_call(
        _byol_loss_kernel,
        out_shape=jax.ShapeDtypeStruct((1, 1), jnp.float32),
        grid=(1,),
        in_specs=[pl.BlockSpec((V, B, D), lambda i: (0, 0, 0)),
                  pl.BlockSpec((V, B, D), lambda i: (0, 0, 0))],
        out_specs=pl.BlockSpec((1, 1), lambda i: (0, 0)),
    )(p_pair.astype(jnp.float32), z_pair.astype(jnp.float32))
    return out[0, 0]


# ------------------------- deterministic parameters ---------------------------

def init_linear(key, din, dout):
    kw, kb = jax.random.split(key)
    bound = 1.0 / jnp.sqrt(jnp.float32(din))
    w = jax.random.uniform(kw, (din, dout), jnp.float32, -bound, bound)
    b = jax.random.uniform(kb, (1, dout), jnp.float32, -bound, bound)
    return w, b


def init_mlp(key, din, hidden, dout):
    k1, k2 = jax.random.split(key)
    w1, b1 = init_linear(k1, din, hidden)
    gamma = jnp.ones((1, hidden), jnp.float32)   # BN weight
    beta = jnp.zeros((1, hidden), jnp.float32)   # BN bias
    w2, b2 = init_linear(k2, hidden, dout)
    return (w1, b1, gamma, beta, w2, b2)


# ------------------------------- BYOL forward ----------------------------------

def byol_forward(x1, x2, online_bb, online_proj, predictor, target_bb, target_proj,
                 reuse_online_for_target=False):
    B = x1.shape[0]
    # flatten NCHW, cast to bf16 BEFORE the concat (halves the largest staging
    # buffer) and stack both views along batch: one backbone weight pass serves
    # both views (no BN in the backbone, so pooling views is exact).
    xf = jnp.concatenate([x1.reshape(B, -1).astype(jnp.bfloat16),
                          x2.reshape(B, -1).astype(jnp.bfloat16)], axis=0)

    f_o = pallas_linear(xf, *online_bb)            # online backbone  (2B, FEAT) bf16
    z_o = pallas_mlp(f_o, online_proj, B)          # projector        (2B, OUT)  f32
    p_o = pallas_mlp(z_o, predictor, B)            # predictor        (2B, OUT)  f32

    if reuse_online_for_target:
        # valid only while target weights are byte-identical to the online ones
        z_t = jax.lax.stop_gradient(z_o)
    else:
        # torch.no_grad() target branch
        f_t = pallas_linear(xf, *target_bb)
        z_t = jax.lax.stop_gradient(pallas_mlp(f_t, target_proj, B))

    OUT = p_o.shape[-1]
    # symmetric loss; (p1, z2) / (p2, z1) pairing happens inside the kernel
    loss = pallas_byol_loss(p_o.reshape(2, B, OUT), z_t.reshape(2, B, OUT))
    return {"loss": loss, "corr": jnp.array(0), "rank": jnp.array(0)}


# --------------------------------- reference -----------------------------------

def _ref_forward(x1, x2, online_bb, online_proj, predictor, target_bb, target_proj,
                 matmul_dtype=jnp.float32, backbone_out_dtype=None):
    # Pure-JAX reference of the PyTorch forward; matmul_dtype controls the
    # matmul-input precision policy, backbone_out_dtype mirrors the kernels'
    # bf16 feature writeback.
    def lin(x, w, b):
        return jnp.dot(x.astype(matmul_dtype), w.astype(matmul_dtype),
                       preferred_element_type=jnp.float32) + b

    def mlp(x, p):
        w1, b1, g, beta, w2, b2 = p
        h = lin(x, w1, b1)
        m = jnp.mean(h, axis=0, keepdims=True)
        v = jnp.mean((h - m) ** 2, axis=0, keepdims=True)
        h = (h - m) * jax.lax.rsqrt(v + BN_EPS) * g + beta
        return lin(jnp.maximum(h, 0.0), w2, b2)

    def enc(x, bb, proj):
        f = lin(x.reshape(x.shape[0], -1), *bb)
        if backbone_out_dtype is not None:
            f = f.astype(backbone_out_dtype).astype(jnp.float32)
        return mlp(f, proj)

    def D(p, z):
        num = jnp.sum(p * z, -1)
        pn = jnp.maximum(jnp.linalg.norm(p, axis=-1), COS_EPS)
        zn = jnp.maximum(jnp.linalg.norm(z, axis=-1), COS_EPS)
        return -jnp.mean(num / (pn * zn))

    z1o, z2o = enc(x1, online_bb, online_proj), enc(x2, online_bb, online_proj)
    p1o, p2o = mlp(z1o, predictor), mlp(z2o, predictor)
    z1t, z2t = enc(x1, target_bb, target_proj), enc(x2, target_bb, target_proj)
    return D(p1o, z2t) / 2 + D(p2o, z1t) / 2


# ----------------------------------- main ---------------------------------------

if __name__ == "__main__":
    # Small demo shapes (real model: hidden=4096, projection=256, resnet features).
    B, C, H, W = 8, 4, 16, 16
    FEAT, HID, OUT = 128, 256, 128

    key = jax.random.PRNGKey(0)
    kx1, kx2, kbb, kproj, kpred = jax.random.split(key, 5)

    x1 = jax.random.normal(kx1, (B, C, H, W), jnp.float32)
    x2 = jax.random.normal(kx2, (B, C, H, W), jnp.float32)

    online_bb = init_linear(kbb, C * H * W, FEAT)      # backbone: flatten + Linear
    online_proj = init_mlp(kproj, FEAT, HID, OUT)      # projector MLP (norm=Identity)
    predictor = init_mlp(kpred, FEAT, HID, OUT)        # online predictor MLP
    # target_encoder = copy.deepcopy(online_encoder) -> identical weights
    target_bb = tuple(jnp.array(p) for p in online_bb)
    target_proj = tuple(jnp.array(p) for p in online_proj)

    fwd = jax.jit(byol_forward)
    out = fwd(x1, x2, online_bb, online_proj, predictor, target_bb, target_proj)
    loss = jax.block_until_ready(out["loss"])

    # Tight check vs a reference that uses the same bf16-input / f32-accumulate /
    # bf16-feature-writeback policy as the kernels (validates the kernel math).
    ref_bf16 = _ref_forward(x1, x2, online_bb, online_proj, predictor,
                            target_bb, target_proj,
                            matmul_dtype=jnp.bfloat16,
                            backbone_out_dtype=jnp.bfloat16)
    # Loose check vs a pure-f32 reference; the gap is only the bf16 MXU-input
    # precision policy, not the kernel structure.
    ref_f32 = _ref_forward(x1, x2, online_bb, online_proj, predictor,
                           target_bb, target_proj, matmul_dtype=jnp.float32)

    assert jnp.isfinite(loss)
    assert jnp.allclose(loss, ref_bf16, rtol=5e-3, atol=5e-3), (loss, ref_bf16)
    assert jnp.allclose(loss, ref_f32, rtol=1e-1, atol=1e-1), (loss, ref_f32)

    print("KERNEL_OK")
</pallas_src>

<mosaic_0001>
module attributes {stable_mosaic.version = 11 : i64} {
  func.func @_linear_kernel(%arg0: i32, %arg1: i32, %arg2: i32, %arg3: memref<16x1024xbf16, #tpu.memory_space<vmem>>, %arg4: memref<1024x128xbf16, #tpu.memory_space<vmem>>, %arg5: memref<1x128xf32, #tpu.memory_space<vmem>>, %arg6: memref<16x128xbf16, #tpu.memory_space<vmem>>, %arg7: memref<16x128xf32, #tpu.memory_space<vmem>>) attributes {dimension_semantics = [#tpu.dimension_semantics<parallel>, #tpu.dimension_semantics<parallel>, #tpu.dimension_semantics<arbitrary>], iteration_bounds = array<i64: 1, 1, 1>, scalar_prefetch = 0 : i64, scratch_operands = 1 : i64, tpu.core_type = #tpu.core_type<tc>, window_params = [{transform_indices = @transform_0, window_bounds = array<i64: 16, 1024>}, {transform_indices = @transform_1, window_bounds = array<i64: 1024, 128>}, {transform_indices = @transform_2, window_bounds = array<i64: 1, 128>}, {transform_indices = @transform_3, window_bounds = array<i64: 16, 128>}]} {
    %c0_i32 = arith.constant 0 : i32
    %0 = arith.cmpi eq, %arg2, %c0_i32 : i32
    %1 = arith.extui %0 : i1 to i32
    %c0_i32_0 = arith.constant 0 : i32
    %2 = arith.cmpi ne, %1, %c0_i32_0 : i32
    scf.if %2 {
      %cst_10 = arith.constant 0.000000e+00 : f32
      %12 = vector.broadcast %cst_10 : f32 to vector<16x128xf32>
      %c0_11 = arith.constant 0 : index
      %c0_12 = arith.constant 0 : index
      %13 = vector.load %arg7[%c0_11, %c0_12] : memref<16x128xf32, #tpu.memory_space<vmem>>, vector<16x128xf32>
      tpu.vector_store %arg7[%c0_11, %c0_12], %12 {strides = array<i32>} : memref<16x128xf32, #tpu.memory_space<vmem>>, vector<16x128xf32>,
    } else {
    }
    %c0 = arith.constant 0 : index
    %c0_1 = arith.constant 0 : index
    %3 = vector.load %arg7[%c0, %c0_1] : memref<16x128xf32, #tpu.memory_space<vmem>>, vector<16x128xf32>
    %c0_2 = arith.constant 0 : index
    %c0_3 = arith.constant 0 : index
    %4 = vector.load %arg3[%c0_2, %c0_3] : memref<16x1024xbf16, #tpu.memory_space<vmem>>, vector<16x1024xbf16>
    %c0_4 = arith.constant 0 : index
    %c0_5 = arith.constant 0 : index
    %5 = vector.load %arg4[%c0_4, %c0_5] : memref<1024x128xbf16, #tpu.memory_space<vmem>>, vector<1024x128xbf16>
    %cst = arith.constant dense<0.000000e+00> : vector<16x128xf32>
    %6 = tpu.matmul %4, %5, %cst {dimension_numbers = #tpu.dot_dimension_numbers<[1], [0], [0], [1], [0, 0, 1, 1], [], []>} : vector<16x1024xbf16>, vector<1024x128xbf16>, vector<16x128xf32> -> vector<16x128xf32>
    %7 = arith.addf %3, %6 : vector<16x128xf32>
    %c0_6 = arith.constant 0 : index
    %c0_7 = arith.constant 0 : index
    %8 = vector.load %arg7[%c0_6, %c0_7] : memref<16x128xf32, #tpu.memory_space<vmem>>, vector<16x128xf32>
    tpu.vector_store %arg7[%c0_6, %c0_7], %7 {strides = array<i32>} : memref<16x128xf32, #tpu.memory_space<vmem>>, vector<16x128xf32>,
    %c0_i32_8 = arith.constant 0 : i32
    %9 = arith.cmpi eq, %arg2, %c0_i32_8 : i32
    %10 = arith.extui %9 : i1 to i32
    %c0_i32_9 = arith.constant 0 : i32
    %11 = arith.cmpi ne, %10, %c0_i32_9 : i32
    scf.if %11 {
      %c0_10 = arith.constant 0 : index
      %c0_11 = arith.constant 0 : index
      %12 = vector.load %arg7[%c0_10, %c0_11] : memref<16x128xf32, #tpu.memory_space<vmem>>, vector<16x128xf32>
      %c0_12 = arith.constant 0 : index
      %c0_13 = arith.constant 0 : index
      %13 = vector.load %arg5[%c0_12, %c0_13] : memref<1x128xf32, #tpu.memory_space<vmem>>, vector<1x128xf32>
      %14 = vector.broadcast %13 : vector<1x128xf32> to vector<16x128xf32>
      %15 = arith.addf %12, %14 : vector<16x128xf32>
      %16 = arith.truncf %15 : vector<16x128xf32> to vector<16x128xbf16>
      %c0_14 = arith.constant 0 : index
      %c0_15 = arith.constant 0 : index
      %17 = vector.load %arg6[%c0_14, %c0_15] : memref<16x128xbf16, #tpu.memory_space<vmem>>, vector<16x128xbf16>
      tpu.vector_store %arg6[%c0_14, %c0_15], %16 {strides = array<i32>} : memref<16x128xbf16, #tpu.memory_space<vmem>>, vector<16x128xbf16>,
    } else {
    }
    return
  }
  func.func @transform_0(%arg0: i32, %arg1: i32, %arg2: i32) -> (i32, i32) {
    %c0_i32 = arith.constant 0 : i32
    return %arg0, %arg2 : i32, i32
  }
  func.func @transform_1(%arg0: i32, %arg1: i32, %arg2: i32) -> (i32, i32) {
    %c0_i32 = arith.constant 0 : i32
    return %arg2, %arg1 : i32, i32
  }
  func.func @transform_2(%arg0: i32, %arg1: i32, %arg2: i32) -> (i32, i32) {
    %c0_i32 = arith.constant 0 : i32
    %c0_i32_0 = arith.constant 0 : i32
    return %c0_i32, %arg1 : i32, i32
  }
  func.func @transform_3(%arg0: i32, %arg1: i32, %arg2: i32) -> (i32, i32) {
    %c0_i32 = arith.constant 0 : i32
    return %arg0, %arg1 : i32, i32
  }
}

module attributes {stable_mosaic.version = 11 : i64} {
  func.func @_mlp_kernel(%arg0: i32, %arg1: memref<16x128xbf16, #tpu.memory_space<vmem>>, %arg2: memref<128x256xbf16, #tpu.memory_space<vmem>>, %arg3: memref<1x256xf32, #tpu.memory_space<vmem>>, %arg4: memref<1x256xf32, #tpu.memory_space<vmem>>, %arg5: memref<1x256xf32, #tpu.memory_space<vmem>>, %arg6: memref<256x128xbf16, #tpu.memory_space<vmem>>, %arg7: memref<1x128xf32, #tpu.memory_space<vmem>>, %arg8: memref<16x128xf32, #tpu.memory_space<vmem>>, %arg9: memref<16x128xf32, #tpu.memory_space<vmem>>) attributes {dimension_semantics = [#tpu.dimension_semantics<arbitrary>], iteration_bounds = array<i64: 1>, scalar_prefetch = 0 : i64, scratch_operands = 1 : i64, tpu.core_type = #tpu.core_type<tc>, window_params = [{pipeline_mode = #tpu.pipeline_mode<synchronous>, transform_indices = @transform_0, window_bounds = array<i64: 16, 128>}, {transform_indices = @transform_1, window_bounds = array<i64: 128, 256>}, {transform_indices = @transform_2, window_bounds = array<i64: 1, 256>}, {transform_indices = @transform_3, window_bounds = array<i64: 1, 256>}, {transform_indices = @transform_4, window_bounds = array<i64: 1, 256>}, {transform_indices = @transform_5, window_bounds = array<i64: 256, 128>}, {pipeline_mode = #tpu.pipeline_mode<synchronous>, transform_indices = @transform_6, window_bounds = array<i64: 1, 128>}, {pipeline_mode = #tpu.pipeline_mode<synchronous>, transform_indices = @transform_7, window_bounds = array<i64: 16, 128>}]} {
    %c0_i32 = arith.constant 0 : i32
    %0 = arith.cmpi eq, %arg0, %c0_i32 : i32
    %1 = arith.extui %0 : i1 to i32
    %c0_i32_0 = arith.constant 0 : i32
    %2 = arith.cmpi ne, %1, %c0_i32_0 : i32
    scf.if %2 {
      %cst_32 = arith.constant 0.000000e+00 : f32
      %79 = vector.broadcast %cst_32 : f32 to vector<16x128xf32>
      %c0_33 = arith.constant 0 : index
      %c0_34 = arith.constant 0 : index
      %80 = vector.load %arg9[%c0_33, %c0_34] : memref<16x128xf32, #tpu.memory_space<vmem>>, vector<16x128xf32>
      tpu.vector_store %arg9[%c0_33, %c0_34], %79 {strides = array<i32>} : memref<16x128xf32, #tpu.memory_space<vmem>>, vector<16x128xf32>,
    } else {
    }
    %c0 = arith.constant 0 : index
    %c0_1 = arith.constant 0 : index
    %3 = vector.load %arg1[%c0, %c0_1] : memref<16x128xbf16, #tpu.memory_space<vmem>>, vector<16x128xbf16>
    %c0_2 = arith.constant 0 : index
    %c0_3 = arith.constant 0 : index
    %4 = vector.load %arg2[%c0_2, %c0_3] : memref<128x256xbf16, #tpu.memory_space<vmem>>, vector<128x256xbf16>
    %cst = arith.constant dense<0.000000e+00> : vector<16x256xf32>
    %5 = tpu.matmul %3, %4, %cst {dimension_numbers = #tpu.dot_dimension_numbers<[1], [0], [0], [1], [0, 0, 1, 1], [], []>} : vector<16x128xbf16>, vector<128x256xbf16>, vector<16x256xf32> -> vector<16x256xf32>
    %c0_4 = arith.constant 0 : index
    %c0_5 = arith.constant 0 : index
    %6 = vector.load %arg3[%c0_4, %c0_5] : memref<1x256xf32, #tpu.memory_space<vmem>>, vector<1x256xf32>
    %7 = vector.broadcast %6 : vector<1x256xf32> to vector<16x256xf32>
    %8 = arith.addf %5, %7 : vector<16x256xf32>
    %9 = vector.extract_strided_slice %8 {offsets = [0, 0], sizes = [8, 256], strides = [1, 1]} : vector<16x256xf32> to vector<8x256xf32>
    %cst_6 = arith.constant dense<0.000000e+00> : vector<256xf32>
    %10 = vector.multi_reduction <add>, %9, %cst_6 [0] : vector<8x256xf32> to vector<256xf32>
    %11 = vector.shape_cast %10 : vector<256xf32> to vector<1x256xf32>
    %cst_7 = arith.constant 8.000000e+00 : f32
    %12 = vector.broadcast %cst_7 : f32 to vector<1x256xf32>
    %13 = arith.divf %11, %12 : vector<1x256xf32>
    %14 = arith.mulf %9, %9 : vector<8x256xf32>
    %cst_8 = arith.constant dense<0.000000e+00> : vector<256xf32>
    %15 = vector.multi_reduction <add>, %14, %cst_8 [0] : vector<8x256xf32> to vector<256xf32>
    %16 = vector.shape_cast %15 : vector<256xf32> to vector<1x256xf32>
    %cst_9 = arith.constant 8.000000e+00 : f32
    %17 = vector.broadcast %cst_9 : f32 to vector<1x256xf32>
    %18 = arith.divf %16, %17 : vector<1x256xf32>
    %19 = arith.mulf %13, %13 : vector<1x256xf32>
    %20 = arith.subf %18, %19 : vector<1x256xf32>
    %cst_10 = arith.constant 0.000000e+00 : f32
    %21 = vector.broadcast %cst_10 : f32 to vector<1x256xf32>
    %22 = arith.maximumf %20, %21 : vector<1x256xf32>
    %cst_11 = arith.constant 9.99999974E-6 : f32
    %23 = vector.broadcast %cst_11 : f32 to vector<1x256xf32>
    %24 = arith.addf %22, %23 : vector<1x256xf32>
    %25 = math.rsqrt %24 : vector<1x256xf32>
    %26 = vector.extract_strided_slice %8 {offsets = [8, 0], sizes = [8, 256], strides = [1, 1]} : vector<16x256xf32> to vector<8x256xf32>
    %cst_12 = arith.constant dense<0.000000e+00> : vector<256xf32>
    %27 = vector.multi_reduction <add>, %26, %cst_12 [0] : vector<8x256xf32> to vector<256xf32>
    %28 = vector.shape_cast %27 : vector<256xf32> to vector<1x256xf32>
    %cst_13 = arith.constant 8.000000e+00 : f32
    %29 = vector.broadcast %cst_13 : f32 to vector<1x256xf32>
    %30 = arith.divf %28, %29 : vector<1x256xf32>
    %31 = arith.mulf %26, %26 : vector<8x256xf32>
    %cst_14 = arith.constant dense<0.000000e+00> : vector<256xf32>
    %32 = vector.multi_reduction <add>, %31, %cst_14 [0] : vector<8x256xf32> to vector<256xf32>
    %33 = vector.shape_cast %32 : vector<256xf32> to vector<1x256xf32>
    %cst_15 = arith.constant 8.000000e+00 : f32
    %34 = vector.broadcast %cst_15 : f32 to vector<1x256xf32>
    %35 = arith.divf %33, %34 : vector<1x256xf32>
    %36 = arith.mulf %30, %30 : vector<1x256xf32>
    %37 = arith.subf %35, %36 : vector<1x256xf32>
    %cst_16 = arith.constant 0.000000e+00 : f32
    %38 = vector.broadcast %cst_16 : f32 to vector<1x256xf32>
    %39 = arith.maximumf %37, %38 : vector<1x256xf32>
    %cst_17 = arith.constant 9.99999974E-6 : f32
    %40 = vector.broadcast %cst_17 : f32 to vector<1x256xf32>
    %41 = arith.addf %39, %40 : vector<1x256xf32>
    %42 = math.rsqrt %41 : vector<1x256xf32>
    %43 = tpu.iota {dimensions = array<i32: 0>} : vector<16x1xi32>
    %c8_i32 = arith.constant 8 : i32
    %44 = vector.broadcast %c8_i32 : i32 to vector<16x1xi32>
    %45 = arith.cmpi sge, %43, %44 : vector<16x1xi32>
    %46 = vector.shape_cast %45 : vector<16x1xi1> to vector<16x1xi1>
    %47 = vector.broadcast %46 : vector<16x1xi1> to vector<16x256xi1>
    %48 = vector.shape_cast %30 : vector<1x256xf32> to vector<1x256xf32>
    %49 = vector.broadcast %48 : vector<1x256xf32> to vector<16x256xf32>
    %50 = vector.shape_cast %13 : vector<1x256xf32> to vector<1x256xf32>
    %51 = vector.broadcast %50 : vector<1x256xf32> to vector<16x256xf32>
    %52 = arith.select %47, %49, %51 : vector<16x256xi1>, vector<16x256xf32>
    %53 = vector.shape_cast %45 : vector<16x1xi1> to vector<16x1xi1>
    %54 = vector.broadcast %53 : vector<16x1xi1> to vector<16x256xi1>
    %55 = vector.shape_cast %42 : vector<1x256xf32> to vector<1x256xf32>
    %56 = vector.broadcast %55 : vector<1x256xf32> to vector<16x256xf32>
    %57 = vector.shape_cast %25 : vector<1x256xf32> to vector<1x256xf32>
    %58 = vector.broadcast %57 : vector<1x256xf32> to vector<16x256xf32>
    %59 = arith.select %54, %56, %58 : vector<16x256xi1>, vector<16x256xf32>
    %60 = arith.subf %8, %52 : vector<16x256xf32>
    %61 = arith.mulf %60, %59 : vector<16x256xf32>
    %c0_18 = arith.constant 0 : index
    %c0_19 = arith.constant 0 : index
    %62 = vector.load %arg4[%c0_18, %c0_19] : memref<1x256xf32, #tpu.memory_space<vmem>>, vector<1x256xf32>
    %63 = vector.broadcast %62 : vector<1x256xf32> to vector<16x256xf32>
    %64 = arith.mulf %61, %63 : vector<16x256xf32>
    %c0_20 = arith.constant 0 : index
    %c0_21 = arith.constant 0 : index
    %65 = vector.load %arg5[%c0_20, %c0_21] : memref<1x256xf32, #tpu.memory_space<vmem>>, vector<1x256xf32>
    %66 = vector.broadcast %65 : vector<1x256xf32> to vector<16x256xf32>
    %67 = arith.addf %64, %66 : vector<16x256xf32>
    %cst_22 = arith.constant 0.000000e+00 : f32
    %68 = vector.broadcast %cst_22 : f32 to vector<16x256xf32>
    %69 = arith.maximumf %67, %68 : vector<16x256xf32>
    %c0_23 = arith.constant 0 : index
    %c0_24 = arith.constant 0 : index
    %70 = vector.load %arg9[%c0_23, %c0_24] : memref<16x128xf32, #tpu.memory_space<vmem>>, vector<16x128xf32>
    %71 = arith.truncf %69 : vector<16x256xf32> to vector<16x256xbf16>
    %c0_25 = arith.constant 0 : index
    %c0_26 = arith.constant 0 : index
    %72 = vector.load %arg6[%c0_25, %c0_26] : memref<256x128xbf16, #tpu.memory_space<vmem>>, vector<256x128xbf16>
    %cst_27 = arith.constant dense<0.000000e+00> : vector<16x128xf32>
    %73 = tpu.matmul %71, %72, %cst_27 {dimension_numbers = #tpu.dot_dimension_numbers<[1], [0], [0], [1], [0, 0, 1, 1], [], []>} : vector<16x256xbf16>, vector<256x128xbf16>, vector<16x128xf32> -> vector<16x128xf32>
    %74 = arith.addf %70, %73 : vector<16x128xf32>
    %c0_28 = arith.constant 0 : index
    %c0_29 = arith.constant 0 : index
    %75 = vector.load %arg9[%c0_28, %c0_29] : memref<16x128xf32, #tpu.memory_space<vmem>>, vector<16x128xf32>
    tpu.vector_store %arg9[%c0_28, %c0_29], %74 {strides = array<i32>} : memref<16x128xf32, #tpu.memory_space<vmem>>, vector<16x128xf32>,
    %c0_i32_30 = arith.constant 0 : i32
    %76 = arith.cmpi eq, %arg0, %c0_i32_30 : i32
    %77 = arith.extui %76 : i1 to i32
    %c0_i32_31 = arith.constant 0 : i32
    %78 = arith.cmpi ne, %77, %c0_i32_31 : i32
    scf.if %78 {
      %c0_32 = arith.constant 0 : index
      %c0_33 = arith.constant 0 : index
      %79 = vector.load %arg9[%c0_32, %c0_33] : memref<16x128xf32, #tpu.memory_space<vmem>>, vector<16x128xf32>
      %c0_34 = arith.constant 0 : index
      %c0_35 = arith.constant 0 : index
      %80 = vector.load %arg7[%c0_34, %c0_35] : memref<1x128xf32, #tpu.memory_space<vmem>>, vector<1x128xf32>
      %81 = vector.broadcast %80 : vector<1x128xf32> to vector<16x128xf32>
      %82 = arith.addf %79, %81 : vector<16x128xf32>
      %c0_36 = arith.constant 0 : index
      %c0_37 = arith.constant 0 : index
      %83 = vector.load %arg8[%c0_36, %c0_37] : memref<16x128xf32, #tpu.memory_space<vmem>>, vector<16x128xf32>
      tpu.vector_store %arg8[%c0_36, %c0_37], %82 {strides = array<i32>} : memref<16x128xf32, #tpu.memory_space<vmem>>, vector<16x128xf32>,
    } else {
    }
    return
  }
  func.func @transform_0(%arg0: i32) -> (i32, i32) {
    %c0_i32 = arith.constant 0 : i32
    %c0_i32_0 = arith.constant 0 : i32
    %c0_i32_1 = arith.constant 0 : i32
    return %c0_i32, %c0_i32_0 : i32, i32
  }
  func.func @transform_1(%arg0: i32) -> (i32, i32) {
    %c0_i32 = arith.constant 0 : i32
    %c0_i32_0 = arith.constant 0 : i32
    return %c0_i32, %arg0 : i32, i32
  }
  func.func @transform_2(%arg0: i32) -> (i32, i32) {
    %c0_i32 = arith.constant 0 : i32
    %c0_i32_0 = arith.constant 0 : i32
    return %c0_i32, %arg0 : i32, i32
  }
  func.func @transform_3(%arg0: i32) -> (i32, i32) {
    %c0_i32 = arith.constant 0 : i32
    %c0_i32_0 = arith.constant 0 : i32
    return %c0_i32, %arg0 : i32, i32
  }
  func.func @transform_4(%arg0: i32) -> (i32, i32) {
    %c0_i32 = arith.constant 0 : i32
    %c0_i32_0 = arith.constant 0 : i32
    return %c0_i32, %arg0 : i32, i32
  }
  func.func @transform_5(%arg0: i32) -> (i32, i32) {
    %c0_i32 = arith.constant 0 : i32
    %c0_i32_0 = arith.constant 0 : i32
    return %arg0, %c0_i32 : i32, i32
  }
  func.func @transform_6(%arg0: i32) -> (i32, i32) {
    %c0_i32 = arith.constant 0 : i32
    %c0_i32_0 = arith.constant 0 : i32
    %c0_i32_1 = arith.constant 0 : i32
    return %c0_i32, %c0_i32_0 : i32, i32
  }
  func.func @transform_7(%arg0: i32) -> (i32, i32) {
    %c0_i32 = arith.constant 0 : i32
    %c0_i32_0 = arith.constant 0 : i32
    %c0_i32_1 = arith.constant 0 : i32
    return %c0_i32, %c0_i32_0 : i32, i32
  }
}

module attributes {stable_mosaic.version = 11 : i64} {
  func.func @_byol_loss_kernel(%arg0: i32, %arg1: memref<2x8x128xf32, #tpu.memory_space<vmem>>, %arg2: memref<2x8x128xf32, #tpu.memory_space<vmem>>, %arg3: memref<1x1xf32, #tpu.memory_space<vmem>>) attributes {dimension_semantics = [#tpu.dimension_semantics<arbitrary>], iteration_bounds = array<i64: 1>, scalar_prefetch = 0 : i64, scratch_operands = 0 : i64, tpu.core_type = #tpu.core_type<tc>, window_params = [{pipeline_mode = #tpu.pipeline_mode<synchronous>, transform_indices = @transform_0, window_bounds = array<i64: 2, 8, 128>}, {pipeline_mode = #tpu.pipeline_mode<synchronous>, transform_indices = @transform_1, window_bounds = array<i64: 2, 8, 128>}, {pipeline_mode = #tpu.pipeline_mode<synchronous>, transform_indices = @transform_2, window_bounds = array<i64: 1, 1>}]} {
    %c0 = arith.constant 0 : index
    %c0_0 = arith.constant 0 : index
    %c0_1 = arith.constant 0 : index
    %0 = vector.load %arg1[%c0, %c0_0, %c0_1] : memref<2x8x128xf32, #tpu.memory_space<vmem>>, vector<2x8x128xf32>
    %c0_2 = arith.constant 0 : index
    %c0_3 = arith.constant 0 : index
    %c0_4 = arith.constant 0 : index
    %1 = vector.load %arg2[%c0_2, %c0_3, %c0_4] : memref<2x8x128xf32, #tpu.memory_space<vmem>>, vector<2x8x128xf32>
    %2 = vector.extract_strided_slice %0 {offsets = [0, 0, 0], sizes = [1, 8, 128], strides = [1, 1, 1]} : vector<2x8x128xf32> to vector<1x8x128xf32>
    %3 = vector.shape_cast %2 : vector<1x8x128xf32> to vector<8x128xf32>
    %4 = vector.extract_strided_slice %1 {offsets = [1, 0, 0], sizes = [1, 8, 128], strides = [1, 1, 1]} : vector<2x8x128xf32> to vector<1x8x128xf32>
    %5 = vector.shape_cast %4 : vector<1x8x128xf32> to vector<8x128xf32>
    %6 = arith.mulf %3, %5 : vector<8x128xf32>
    %cst = arith.constant dense<0.000000e+00> : vector<8xf32>
    %7 = vector.multi_reduction <add>, %6, %cst [1] : vector<8x128xf32> to vector<8xf32>
    %8 = vector.shape_cast %7 : vector<8xf32> to vector<8x1xf32>
    %9 = arith.mulf %3, %3 : vector<8x128xf32>
    %cst_5 = arith.constant dense<0.000000e+00> : vector<8xf32>
    %10 = vector.multi_reduction <add>, %9, %cst_5 [1] : vector<8x128xf32> to vector<8xf32>
    %11 = vector.shape_cast %10 : vector<8xf32> to vector<8x1xf32>
    %12 = math.rsqrt %11 : vector<8x1xf32>
    %cst_6 = arith.constant 1.000000e+08 : f32
    %13 = vector.broadcast %cst_6 : f32 to vector<8x1xf32>
    %14 = arith.minimumf %12, %13 : vector<8x1xf32>
    %15 = arith.mulf %5, %5 : vector<8x128xf32>
    %cst_7 = arith.constant dense<0.000000e+00> : vector<8xf32>
    %16 = vector.multi_reduction <add>, %15, %cst_7 [1] : vector<8x128xf32> to vector<8xf32>
    %17 = vector.shape_cast %16 : vector<8xf32> to vector<8x1xf32>
    %18 = math.rsqrt %17 : vector<8x1xf32>
    %cst_8 = arith.constant 1.000000e+08 : f32
    %19 = vector.broadcast %cst_8 : f32 to vector<8x1xf32>
    %20 = arith.minimumf %18, %19 : vector<8x1xf32>
    %21 = arith.mulf %8, %14 : vector<8x1xf32>
    %22 = arith.mulf %21, %20 : vector<8x1xf32>
    %23 = vector.shape_cast %22 : vector<8x1xf32> to vector<1x8x1xf32>
    %cst_9 = arith.constant dense<0.000000e+00> : vector<1xf32>
    %24 = vector.multi_reduction <add>, %23, %cst_9 [1, 2] : vector<1x8x1xf32> to vector<1xf32>
    %25 = vector.shape_cast %24 : vector<1xf32> to vector<1x1x1xf32>
    %26 = vector.extract %25[0, 0, 0] : f32 from vector<1x1x1xf32>
    %27 = vector.extract_strided_slice %0 {offsets = [1, 0, 0], sizes = [1, 8, 128], strides = [1, 1, 1]} : vector<2x8x128xf32> to vector<1x8x128xf32>
    %28 = vector.shape_cast %27 : vector<1x8x128xf32> to vector<8x128xf32>
    %29 = vector.extract_strided_slice %1 {offsets = [0, 0, 0], sizes = [1, 8, 128], strides = [1, 1, 1]} : vector<2x8x128xf32> to vector<1x8x128xf32>
    %30 = vector.shape_cast %29 : vector<1x8x128xf32> to vector<8x128xf32>
    %31 = arith.mulf %28, %30 : vector<8x128xf32>
    %cst_10 = arith.constant dense<0.000000e+00> : vector<8xf32>
    %32 = vector.multi_reduction <add>, %31, %cst_10 [1] : vector<8x128xf32> to vector<8xf32>
    %33 = vector.shape_cast %32 : vector<8xf32> to vector<8x1xf32>
    %34 = arith.mulf %28, %28 : vector<8x128xf32>
    %cst_11 = arith.constant dense<0.000000e+00> : vector<8xf32>
    %35 = vector.multi_reduction <add>, %34, %cst_11 [1] : vector<8x128xf32> to vector<8xf32>
    %36 = vector.shape_cast %35 : vector<8xf32> to vector<8x1xf32>
    %37 = math.rsqrt %36 : vector<8x1xf32>
    %cst_12 = arith.constant 1.000000e+08 : f32
    %38 = vector.broadcast %cst_12 : f32 to vector<8x1xf32>
    %39 = arith.minimumf %37, %38 : vector<8x1xf32>
    %40 = arith.mulf %30, %30 : vector<8x128xf32>
    %cst_13 = arith.constant dense<0.000000e+00> : vector<8xf32>
    %41 = vector.multi_reduction <add>, %40, %cst_13 [1] : vector<8x128xf32> to vector<8xf32>
    %42 = vector.shape_cast %41 : vector<8xf32> to vector<8x1xf32>
    %43 = math.rsqrt %42 : vector<8x1xf32>
    %cst_14 = arith.constant 1.000000e+08 : f32
    %44 = vector.broadcast %cst_14 : f32 to vector<8x1xf32>
    %45 = arith.minimumf %43, %44 : vector<8x1xf32>
    %46 = arith.mulf %33, %39 : vector<8x1xf32>
    %47 = arith.mulf %46, %45 : vector<8x1xf32>
    %48 = vector.shape_cast %47 : vector<8x1xf32> to vector<1x8x1xf32>
    %cst_15 = arith.constant dense<0.000000e+00> : vector<1xf32>
    %49 = vector.multi_reduction <add>, %48, %cst_15 [1, 2] : vector<1x8x1xf32> to vector<1xf32>
    %50 = vector.shape_cast %49 : vector<1xf32> to vector<1x1x1xf32>
    %51 = vector.extract %50[0, 0, 0] : f32 from vector<1x1x1xf32>
    %52 = arith.addf %26, %51 : f32
    %cst_16 = arith.constant -5.000000e-01 : f32
    %53 = arith.mulf %cst_16, %52 : f32
    %cst_17 = arith.constant 8.000000e+00 : f32
    %54 = arith.divf %53, %cst_17 : f32
    %55 = vector.broadcast %54 : f32 to vector<1x1xf32>
    %c0_18 = arith.constant 0 : index
    %c0_19 = arith.constant 0 : index
    %56 = vector.load %arg3[%c0_18, %c0_19] : memref<1x1xf32, #tpu.memory_space<vmem>>, vector<1x1xf32>
    tpu.vector_store %arg3[%c0_18, %c0_19], %55 {strides = array<i32>} : memref<1x1xf32, #tpu.memory_space<vmem>>, vector<1x1xf32>,
    return
  }
  func.func @transform_0(%arg0: i32) -> (i32, i32, i32) {
    %c0_i32 = arith.constant 0 : i32
    %c0_i32_0 = arith.constant 0 : i32
    %c0_i32_1 = arith.constant 0 : i32
    %c0_i32_2 = arith.constant 0 : i32
    return %c0_i32, %c0_i32_0, %c0_i32_1 : i32, i32, i32
  }
  func.func @transform_1(%arg0: i32) -> (i32, i32, i32) {
    %c0_i32 = arith.constant 0 : i32
    %c0_i32_0 = arith.constant 0 : i32
    %c0_i32_1 = arith.constant 0 : i32
    %c0_i32_2 = arith.constant 0 : i32
    return %c0_i32, %c0_i32_0, %c0_i32_1 : i32, i32, i32
  }
  func.func @transform_2(%arg0: i32) -> (i32, i32) {
    %c0_i32 = arith.constant 0 : i32
    %c0_i32_0 = arith.constant 0 : i32
    %c0_i32_1 = arith.constant 0 : i32
    return %c0_i32, %c0_i32_0 : i32, i32
  }
}

</mosaic_0001>

<llo_original>
// kernel: byol_forward.11
$region0: #{byol_forward.11}
  #allocation0 [shape = 'u32[]', space=smem, size = 0x4, offset = 0x4, fixed_abs, tag = 'smem constant byte address 0x4 - core index']
  #allocation1 [shape = 'u32[144,128]{1,0:T(1,128)}', space=vmem, size = 0x12000, scoped, tag = 'internal scratch']
  %s0 = inlined_call_operand.vmem [shape: f32[2,8,128], index: 0, kind: input, shape index: {}]
  %s1 = inlined_call_operand.vmem [shape: f32[2,8,128], index: 1, kind: input, shape index: {}]
  %s2 = inlined_call_operand.hbm [shape: f32[1,1], index: 2, kind: output, shape index: {}]
  %s3 = sld [smem:[#allocation0]]
  $region18: #{byol_forward.11} parent=0
    _
  %s5 = ssub.s32 1, %s3
  %s6 = scalar_select 0, %s5, %s3
  $region1: #{byol_forward.11} parent=0
    #allocation2 [shape = 'u8[512]{0}', space=vmem, size = 0x400, scoped, tag = 'output window, operand 0, single buffered']
    #allocation3 [shape = 's32[1]{0}', space=sflag, size = 0x4, scoped, tag = 'scoped memory for byol_forward.11']
    %7 = vsyncpa [#allocation3], 0
    // Predicated region
    $region2: #{byol_forward.11} parent=1 // pred_check
      _
    $region3: #{byol_forward.11} parent=1 // pred_check_branch
      %9 = sbr.rel (0) target = $region5
    $region4: #{byol_forward.11} parent=1 // pred_region
      _
    $region5: #{byol_forward.11} parent=1 // pred_fallthru
      _
    // Predicated region
    $region6: #{byol_forward.11} parent=1 // pred_check
      _
    $region7: #{byol_forward.11} parent=1 // pred_check_branch
      %11 = sbr.rel (0) target = $region9
    $region8: #{byol_forward.11} parent=1 // pred_region
      _
    $region9: #{byol_forward.11} parent=1 // pred_fallthru
      _
    %v12 = vld [vmem:[%s0] sm:$0xff]
    %v13 = vld [vmem:[%s0 + $0x8] sm:$0xff]
    %v14 = vld [vmem:[%s1] sm:$0xff]
    %v15 = vld [vmem:[%s1 + $0x8] sm:$0xff]
    %v16 = vmul.f32 %v12, %v15
    %17 = vadd.xlane.f32.xlu0 %v16
    %v18 = vpop.xlane.xlu0 %17
    %v19 = vmul.f32 %v12, %v12
    %20 = vadd.xlane.f32.xlu0 %v19
    %v21 = vpop.xlane.xlu0 %20
    %v22 = vrsqrt.pop %v21
    %v23 = vmin.f32 %v22, 1e+08
    %v24 = vmul.f32 %v15, %v15
    %25 = vadd.xlane.f32.xlu0 %v24
    %v26 = vpop.xlane.xlu0 %25
    %v27 = vrsqrt.pop %v26
    %v28 = vmin.f32 %v27, 1e+08
    %v29 = vmul.f32 %v18, %v23
    %v30 = vmul.f32 %v29, %v28
    %vm31 = vcmask 7168
    %v32 = vsel %vm31, %v30, 0.0
    %33 = vadd.xlane.f32.xlu0 %v32
    %v34 = vpop.xlane.xlu0 %33
    %v35 = vrot.slane %v34, 4
    %v36 = vadd.f32 %v34, %v35
    %v37 = vrot.slane %v36, 2
    %v38 = vadd.f32 %v36, %v37
    %v39 = vrot.slane %v38, 1
    %v40 = vadd.f32 %v38, %v39
    %s41 = vtos %v40
    %v42 = vmul.f32 %v13, %v14
    %43 = vadd.xlane.f32.xlu0 %v42
    %v44 = vpop.xlane.xlu0 %43
    %v45 = vmul.f32 %v13, %v13
    %46 = vadd.xlane.f32.xlu0 %v45
    %v47 = vpop.xlane.xlu0 %46
    %v48 = vrsqrt.pop %v47
    %v49 = vmin.f32 %v48, 1e+08
    %v50 = vmul.f32 %v14, %v14
    %51 = vadd.xlane.f32.xlu0 %v50
    %v52 = vpop.xlane.xlu0 %51
    %v53 = vrsqrt.pop %v52
    %v54 = vmin.f32 %v53, 1e+08
    %v55 = vmul.f32 %v44, %v49
    %v56 = vmul.f32 %v55, %v54
    %v57 = vsel %vm31, %v56, 0.0
    %58 = vadd.xlane.f32.xlu0 %v57
    %v59 = vpop.xlane.xlu0 %58
    %v60 = vrot.slane %v59, 4
    %v61 = vadd.f32 %v59, %v60
    %v62 = vrot.slane %v61, 2
    %v63 = vadd.f32 %v61, %v62
    %v64 = vrot.slane %v63, 1
    %v65 = vadd.f32 %v63, %v64
    %s66 = vtos %v65
    %s67 = sadd.f32 %s41, %s66
    %s68 = smul.f32 %s67, -0.5
    %v69 = vrcp.pop 8.0
    %s70 = vtos %v69
    %s71 = smul.f32 %s68, %s70
    %v72 = vstv %s71
    %vm73 = vcmask 0
    %74 = vst.msk [vmem:[#allocation2] sm:$0x1] %vm73, %v72
    // Predicated region
    $region10: #{byol_forward.11} parent=1 // pred_check
      _
    $region11: #{byol_forward.11} parent=1 // pred_check_branch
      %76 = sbr.rel (0) target = $region13
    $region12: #{byol_forward.11} parent=1 // pred_region
      %s78 = ssub.s32 16, 16
      %79 = vsyncadd [#allocation3], %s78
      %s81 = sshll.u32 [#allocation2], 4
      %s82 = int_to_ptr.vmem [resolvable:$true] %s81
      %84 = dma.vmem_to_hbm [thread:$0]  %s82, 16, %s2, [#allocation3]
    $region13: #{byol_forward.11} parent=1 // pred_fallthru
      _
    // Predicated region
    $region14: #{byol_forward.11} parent=1 // pred_check
      _
    $region15: #{byol_forward.11} parent=1 // pred_check_branch
      %86 = sbr.rel (0) target = $region17
    $region16: #{byol_forward.11} parent=1 // pred_region
      %87 = dma.done [#allocation3], 16
    $region17: #{byol_forward.11} parent=1 // pred_fallthru
      _
    %88 = vsyncpa [#allocation3], 1

// kernel: byol_forward.7
$region0: #{byol_forward.7}
  #allocation0 [shape = 'u32[]', space=smem, size = 0x4, offset = 0x4, fixed_abs, tag = 'smem constant byte address 0x4 - core index']
  #allocation1 [shape = 'u32[144,128]{1,0:T(1,128)}', space=vmem, size = 0x12000, scoped, tag = 'internal scratch']
  #allocation2 [shape = 'f32[16,128]{1,0:T(8,128)}', space=vmem, size = 0x2000, scoped, tag = 'scratch operand']
  %s0 = inlined_call_operand.vmem [shape: bf16[16,128], index: 0, kind: input, shape index: {}]
  %s1 = inlined_call_operand.vmem [shape: bf16[128,256], index: 1, kind: input, shape index: {}]
  %s2 = inlined_call_operand.vmem [shape: f32[1,256], index: 2, kind: input, shape index: {}]
  %s3 = inlined_call_operand.vmem [shape: f32[1,256], index: 3, kind: input, shape index: {}]
  %s4 = inlined_call_operand.vmem [shape: f32[1,256], index: 4, kind: input, shape index: {}]
  %s5 = inlined_call_operand.vmem [shape: bf16[256,128], index: 5, kind: input, shape index: {}]
  %s6 = inlined_call_operand.vmem [shape: f32[1,128], index: 6, kind: input, shape index: {}]
  %s7 = inlined_call_operand.vmem [shape: f32[16,128], index: 7, kind: output, shape index: {}]
  %s8 = sld [smem:[#allocation0]]
  $region46: #{byol_forward.7} parent=0
    _
  %s10 = ssub.s32 1, %s8
  %s11 = scalar_select 0, %s10, %s8
  // Predicated region
  $region2: #{byol_forward.7} parent=0 // pred_check
    _
  $region3: #{byol_forward.7} parent=0 // pred_check_branch
    %13 = sbr.rel (0) target = $region5
  $region4: #{byol_forward.7} parent=0 // pred_region
    _
  $region5: #{byol_forward.7} parent=0 // pred_fallthru
    _
  // Predicated region
  $region6: #{byol_forward.7} parent=0 // pred_check
    _
  $region7: #{byol_forward.7} parent=0 // pred_check_branch
    %15 = sbr.rel (0) target = $region9
  $region8: #{byol_forward.7} parent=0 // pred_region
    _
  $region9: #{byol_forward.7} parent=0 // pred_fallthru
    _
  // Predicated region
  $region10: #{byol_forward.7} parent=0 // pred_check
    _
  $region11: #{byol_forward.7} parent=0 // pred_check_branch
    %17 = sbr.rel (0) target = $region13
  $region12: #{byol_forward.7} parent=0 // pred_region
    _
  $region13: #{byol_forward.7} parent=0 // pred_fallthru
    _
  // Predicated region
  $region14: #{byol_forward.7} parent=0 // pred_check
    _
  $region15: #{byol_forward.7} parent=0 // pred_check_branch
    %19 = sbr.rel (0) target = $region17
  $region16: #{byol_forward.7} parent=0 // pred_region
    _
  $region17: #{byol_forward.7} parent=0 // pred_fallthru
    _
  // Predicated region
  $region18: #{byol_forward.7} parent=0 // pred_check
    _
  $region19: #{byol_forward.7} parent=0 // pred_check_branch
    %21 = sbr.rel (0) target = $region21
  $region20: #{byol_forward.7} parent=0 // pred_region
    _
  $region21: #{byol_forward.7} parent=0 // pred_fallthru
    _
  // Predicated region
  $region22: #{byol_forward.7} parent=0 // pred_check
    _
  $region23: #{byol_forward.7} parent=0 // pred_check_branch
    %23 = sbr.rel (0) target = $region25
  $region24: #{byol_forward.7} parent=0 // pred_region
    _
  $region25: #{byol_forward.7} parent=0 // pred_fallthru
    _
  // Predicated region
  $region26: #{byol_forward.7} parent=0 // pred_check
    _
  $region27: #{byol_forward.7} parent=0 // pred_check_branch
    %25 = sbr.rel (0) target = $region29
  $region28: #{byol_forward.7} parent=0 // pred_region
    _
  $region29: #{byol_forward.7} parent=0 // pred_fallthru
    _
  %p27 = scmp.eq.s32.totalorder 0, 0
  // Predicated region
  $region30: #{byol_forward.7} parent=0 // pred_check
    %p28 = pneg %p27
  $region31: #{byol_forward.7} parent=0 // pred_check_branch
    %30 = sbr.rel (%p28) target = $region33
  $region32: #{byol_forward.7} parent=0 // pred_region
    %31 = vst [vmem:[#allocation2] sm:$0xff] 0.0
    %32 = vst [vmem:[#allocation2 + $0x8] sm:$0xff] 0.0
  $region33: #{byol_forward.7} parent=0 // pred_fallthru
    _
  %v33 = vld [vmem:[%s0] sm:$0xf]
  %v34 = vld [vmem:[%s0 + $0x4] sm:$0xf]
  %v35 = vld [vmem:[%s1] sm:$0xff]
  %v36 = vld [vmem:[%s1 + $0x8] sm:$0xff]
  %v37 = vld [vmem:[%s1 + $0x10] sm:$0xff]
  %v38 = vld [vmem:[%s1 + $0x18] sm:$0xff]
  %v39 = vld [vmem:[%s1 + $0x20] sm:$0xff]
  %v40 = vld [vmem:[%s1 + $0x28] sm:$0xff]
  %v41 = vld [vmem:[%s1 + $0x30] sm:$0xff]
  %v42 = vld [vmem:[%s1 + $0x38] sm:$0xff]
  %v43 = vld [vmem:[%s1 + $0x40] sm:$0xff]
  %v44 = vld [vmem:[%s1 + $0x48] sm:$0xff]
  %v45 = vld [vmem:[%s1 + $0x50] sm:$0xff]
  %v46 = vld [vmem:[%s1 + $0x58] sm:$0xff]
  %v47 = vld [vmem:[%s1 + $0x60] sm:$0xff]
  %v48 = vld [vmem:[%s1 + $0x68] sm:$0xff]
  %v49 = vld [vmem:[%s1 + $0x70] sm:$0xff]
  %v50 = vld [vmem:[%s1 + $0x78] sm:$0xff]
  %v51 = vld [vmem:[%s2] sm:$0x3]
  %v53 = vlaneseq
  %v54 = vshrl.u32 %v53, 7
  %v55 = vsub.s32 0, %v54
  %v56 = vrot.slane %v51, %v55
  %v57 = vlaneseq
  %v58 = vshrl.u32 %v57, 7
  %v59 = vsub.s32 1, %v58
  %v60 = vrot.slane %v51, %v59
  %v65 = vunpack.c.l.b16 %v33
  %v66 = vunpack.c.l.b16 %v34
  %v67 = vpack.c.b16 %v66, %v65
  %v85 = vunpack.c.l.b16 %v35
  %v86 = vunpack.c.h.b16 %v35
  %v87 = vunpack.c.l.b16 %v36
  %v88 = vunpack.c.h.b16 %v36
  %v89 = vunpack.c.l.b16 %v37
  %v90 = vunpack.c.h.b16 %v37
  %v91 = vunpack.c.l.b16 %v38
  %v92 = vunpack.c.h.b16 %v38
  %v93 = vunpack.c.l.b16 %v39
  %v94 = vunpack.c.h.b16 %v39
  %v95 = vunpack.c.l.b16 %v40
  %v96 = vunpack.c.h.b16 %v40
  %v97 = vunpack.c.l.b16 %v41
  %v98 = vunpack.c.h.b16 %v41
  %v99 = vunpack.c.l.b16 %v42
  %v100 = vunpack.c.h.b16 %v42
  %v101 = vunpack.c.l.b16 %v43
  %v102 = vunpack.c.h.b16 %v43
  %v103 = vunpack.c.l.b16 %v44
  %v104 = vunpack.c.h.b16 %v44
  %v105 = vunpack.c.l.b16 %v45
  %v106 = vunpack.c.h.b16 %v45
  %v107 = vunpack.c.l.b16 %v46
  %v108 = vunpack.c.h.b16 %v46
  %v109 = vunpack.c.l.b16 %v47
  %v110 = vunpack.c.h.b16 %v47
  %v111 = vunpack.c.l.b16 %v48
  %v112 = vunpack.c.h.b16 %v48
  %v113 = vunpack.c.l.b16 %v49
  %v114 = vunpack.c.h.b16 %v49
  %v115 = vunpack.c.l.b16 %v50
  %v116 = vunpack.c.h.b16 %v50
  %v117 = vpack.c.b16 %v87, %v85
  %v118 = vpack.c.b16 %v88, %v86
  %v119 = vpack.c.b16 %v91, %v89
  %v120 = vpack.c.b16 %v92, %v90
  %v121 = vpack.c.b16 %v95, %v93
  %v122 = vpack.c.b16 %v96, %v94
  %v123 = vpack.c.b16 %v99, %v97
  %v124 = vpack.c.b16 %v100, %v98
  %v125 = vpack.c.b16 %v103, %v101
  %v126 = vpack.c.b16 %v104, %v102
  %v127 = vpack.c.b16 %v107, %v105
  %v128 = vpack.c.b16 %v108, %v106
  %v129 = vpack.c.b16 %v111, %v109
  %v130 = vpack.c.b16 %v112, %v110
  %v131 = vpack.c.b16 %v115, %v113
  %v132 = vpack.c.b16 %v116, %v114
  %149 = vmatprep.subr.bf16.mxu0 %v118
  %150 = vmatpush1.bf16.msra.mxu0 %v117
  %151 = vmatprep.subr.bf16.mxu0 %v120
  %152 = vmatpush1.bf16.msra.mxu0 %v119
  %153 = vmatprep.subr.bf16.mxu0 %v122
  %154 = vmatpush1.bf16.msra.mxu0 %v121
  %155 = vmatprep.subr.bf16.mxu0 %v124
  %156 = vmatpush1.bf16.msra.mxu0 %v123
  %157 = vmatprep.subr.bf16.mxu0 %v126
  %158 = vmatpush1.bf16.msra.mxu0 %v125
  %159 = vmatprep.subr.bf16.mxu0 %v128
  %160 = vmatpush1.bf16.msra.mxu0 %v127
  %161 = vmatprep.subr.bf16.mxu0 %v130
  %162 = vmatpush1.bf16.msra.mxu0 %v129
  %163 = vmatprep.subr.bf16.mxu0 %v132
  %164 = vmatpush1.bf16.msra.mxu0 %v131
  %165 = vmatprep.subr.bf16.mxu0 0
  %166 = vmatpush1.bf16.msra.mxu0 0
  %167 = vmatprep.subr.bf16.mxu0 0
  %168 = vmatpush1.bf16.msra.mxu0 0
  %169 = vmatprep.subr.bf16.mxu0 0
  %170 = vmatpush1.bf16.msra.mxu0 0
  %171 = vmatprep.subr.bf16.mxu0 0
  %172 = vmatpush1.bf16.msra.mxu0 0
  %173 = vmatprep.subr.bf16.mxu0 0
  %174 = vmatpush1.bf16.msra.mxu0 0
  %175 = vmatprep.subr.bf16.mxu0 0
  %176 = vmatpush1.bf16.msra.mxu0 0
  %177 = vmatprep.subr.bf16.mxu0 0
  %178 = vmatpush1.bf16.msra.mxu0 0
  %179 = vmatprep.subr.bf16.mxu0 0
  %180 = vmatpush1.bf16.msra.mxu0 0
  %181 = vmatprep.mubr.bf16.mxu0 0
  %182 = vmatmul.mubr.bf16.gmra.mrb[0].mxu0 %v67
  %v183 = vpop.f32.mrb[0].mxu0
  %v184 = vadd.f32 %v56, %v183
  %v185 = vpop.f32.mrb[0].mxu0
  %v186 = vadd.f32 %v60, %v185
  %v187 = vpop.f32.mrb[0].mxu0
  %v188 = vadd.f32 %v56, %v187
  %v189 = vpop.f32.mrb[0].mxu0
  %v190 = vadd.f32 %v60, %v189
  %191 = vdwg.mxu0
  %v192 = vrot.slane %v184, 4
  %v193 = vadd.f32 %v184, %v192
  %v194 = vrot.slane %v193, 2
  %v195 = vadd.f32 %v193, %v194
  %v196 = vrot.slane %v195, 1
  %v197 = vadd.f32 %v195, %v196
  %v198 = vrot.slane %v186, 4
  %v199 = vadd.f32 %v186, %v198
  %v200 = vrot.slane %v199, 2
  %v201 = vadd.f32 %v199, %v200
  %v202 = vrot.slane %v201, 1
  %v203 = vadd.f32 %v201, %v202
  %v204 = vrcp.pop 8.0
  %v205 = vmul.f32 %v197, %v204
  %v206 = vmul.f32 %v203, %v204
  %v207 = vmul.f32 %v184, %v184
  %v208 = vmul.f32 %v186, %v186
  %v209 = vrot.slane %v207, 4
  %v210 = vadd.f32 %v207, %v209
  %v211 = vrot.slane %v210, 2
  %v212 = vadd.f32 %v210, %v211
  %v213 = vrot.slane %v212, 1
  %v214 = vadd.f32 %v212, %v213
  %v215 = vrot.slane %v208, 4
  %v216 = vadd.f32 %v208, %v215
  %v217 = vrot.slane %v216, 2
  %v218 = vadd.f32 %v216, %v217
  %v219 = vrot.slane %v218, 1
  %v220 = vadd.f32 %v218, %v219
  %v221 = vmul.f32 %v214, %v204
  %v222 = vmul.f32 %v220, %v204
  %v223 = vmul.f32 %v205, %v205
  %v224 = vmul.f32 %v206, %v206
  %v225 = vsub.f32 %v221, %v223
  %v226 = vsub.f32 %v222, %v224
  %v227 = vmax.f32 %v225, 0.0
  %v228 = vmax.f32 %v226, 0.0
  %v229 = vadd.f32 %v227, 1e-05
  %v230 = vadd.f32 %v228, 1e-05
  %v231 = vrsqrt.pop %v229
  %v232 = vrsqrt.pop %v230
  %v233 = vrot.slane %v188, 4
  %v234 = vadd.f32 %v188, %v233
  %v235 = vrot.slane %v234, 2
  %v236 = vadd.f32 %v234, %v235
  %v237 = vrot.slane %v236, 1
  %v238 = vadd.f32 %v236, %v237
  %v239 = vrot.slane %v190, 4
  %v240 = vadd.f32 %v190, %v239
  %v241 = vrot.slane %v240, 2
  %v242 = vadd.f32 %v240, %v241
  %v243 = vrot.slane %v242, 1
  %v244 = vadd.f32 %v242, %v243
  %v245 = vmul.f32 %v238, %v204
  %v246 = vmul.f32 %v244, %v204
  %v247 = vmul.f32 %v188, %v188
  %v248 = vmul.f32 %v190, %v190
  %v249 = vrot.slane %v247, 4
  %v250 = vadd.f32 %v247, %v249
  %v251 = vrot.slane %v250, 2
  %v252 = vadd.f32 %v250, %v251
  %v253 = vrot.slane %v252, 1
  %v254 = vadd.f32 %v252, %v253
  %v255 = vrot.slane %v248, 4
  %v256 = vadd.f32 %v248, %v255
  %v257 = vrot.slane %v256, 2
  %v258 = vadd.f32 %v256, %v257
  %v259 = vrot.slane %v258, 1
  %v260 = vadd.f32 %v258, %v259
  %v261 = vmul.f32 %v254, %v204
  %v262 = vmul.f32 %v260, %v204
  %v263 = vmul.f32 %v245, %v245
  %v264 = vmul.f32 %v246, %v246
  %v265 = vsub.f32 %v261, %v263
  %v266 = vsub.f32 %v262, %v264
  %v267 = vmax.f32 %v265, 0.0
  %v268 = vmax.f32 %v266, 0.0
  %v269 = vadd.f32 %v267, 1e-05
  %v270 = vadd.f32 %v268, 1e-05
  %v271 = vrsqrt.pop %v269
  %v272 = vrsqrt.pop %v270
  %v273 = vlaneseq
  %v274 = vshrl.u32 %v273, 7
  %v275 = vadd.s32 %v274, 8
  %vm276 = vcmp.ge.s32.totalorder %v274, 8
  %vm277 = vcmp.ge.s32.totalorder %v275, 8
  %v278 = vsel %vm276, 1, 0
  %v279 = vsel %vm277, 1, 0
  %vm280 = vcmp.eq.s32.totalorder %v278, 1
  %vm281 = vcmp.eq.s32.totalorder %v279, 1
  %v282 = vsel %vm280, %v245, %v205
  %v283 = vsel %vm280, %v246, %v206
  %v284 = vsel %vm281, %v245, %v205
  %v285 = vsel %vm281, %v246, %v206
  %v286 = vsel %vm280, %v271, %v231
  %v287 = vsel %vm280, %v272, %v232
  %v288 = vsel %vm281, %v271, %v231
  %v289 = vsel %vm281, %v272, %v232
  %v290 = vsub.f32 %v184, %v282
  %v291 = vsub.f32 %v186, %v283
  %v292 = vsub.f32 %v188, %v284
  %v293 = vsub.f32 %v190, %v285
  %v294 = vmul.f32 %v290, %v286
  %v295 = vmul.f32 %v291, %v287
  %v296 = vmul.f32 %v292, %v288
  %v297 = vmul.f32 %v293, %v289
  %v298 = vld [vmem:[%s3] sm:$0x3]
  %v300 = vlaneseq
  %v301 = vshrl.u32 %v300, 7
  %v302 = vsub.s32 0, %v301
  %v303 = vrot.slane %v298, %v302
  %v304 = vlaneseq
  %v305 = vshrl.u32 %v304, 7
  %v306 = vsub.s32 1, %v305
  %v307 = vrot.slane %v298, %v306
  %v310 = vmul.f32 %v294, %v303
  %v311 = vmul.f32 %v295, %v307
  %v312 = vmul.f32 %v296, %v303
  %v313 = vmul.f32 %v297, %v307
  %v314 = vld [vmem:[%s4] sm:$0x3]
  %v316 = vlaneseq
  %v317 = vshrl.u32 %v316, 7
  %v318 = vsub.s32 0, %v317
  %v319 = vrot.slane %v314, %v318
  %v320 = vlaneseq
  %v321 = vshrl.u32 %v320, 7
  %v322 = vsub.s32 1, %v321
  %v323 = vrot.slane %v314, %v322
  %v326 = vadd.f32 %v310, %v319
  %v327 = vadd.f32 %v311, %v323
  %v328 = vadd.f32 %v312, %v319
  %v329 = vadd.f32 %v313, %v323
  %v330 = vmax.f32 %v326, 0.0
  %v331 = vmax.f32 %v327, 0.0
  %v332 = vmax.f32 %v328, 0.0
  %v333 = vmax.f32 %v329, 0.0
  %v334 = vld [vmem:[#allocation2] sm:$0xff]
  %v335 = vld [vmem:[#allocation2 + $0x8] sm:$0xff]
  %v336 = vpack.c.bf16 %v332, %v330
  %v337 = vpack.c.bf16 %v333, %v331
  %v338 = vld [vmem:[%s5] sm:$0xf]
  %v339 = vld [vmem:[%s5 + $0x4] sm:$0xf]
  %v340 = vld [vmem:[%s5 + $0x8] sm:$0xf]
  %v341 = vld [vmem:[%s5 + $0xc] sm:$0xf]
  %v342 = vld [vmem:[%s5 + $0x10] sm:$0xf]
  %v343 = vld [vmem:[%s5 + $0x14] sm:$0xf]
  %v344 = vld [vmem:[%s5 + $0x18] sm:$0xf]
  %v345 = vld [vmem:[%s5 + $0x1c] sm:$0xf]
  %v346 = vld [vmem:[%s5 + $0x20] sm:$0xf]
  %v347 = vld [vmem:[%s5 + $0x24] sm:$0xf]
  %v348 = vld [vmem:[%s5 + $0x28] sm:$0xf]
  %v349 = vld [vmem:[%s5 + $0x2c] sm:$0xf]
  %v350 = vld [vmem:[%s5 + $0x30] sm:$0xf]
  %v351 = vld [vmem:[%s5 + $0x34] sm:$0xf]
  %v352 = vld [vmem:[%s5 + $0x38] sm:$0xf]
  %v353 = vld [vmem:[%s5 + $0x3c] sm:$0xf]
  %v354 = vld [vmem:[%s5 + $0x40] sm:$0xf]
  %v355 = vld [vmem:[%s5 + $0x44] sm:$0xf]
  %v356 = vld [vmem:[%s5 + $0x48] sm:$0xf]
  %v357 = vld [vmem:[%s5 + $0x4c] sm:$0xf]
  %v358 = vld [vmem:[%s5 + $0x50] sm:$0xf]
  %v359 = vld [vmem:[%s5 + $0x54] sm:$0xf]
  %v360 = vld [vmem:[%s5 + $0x58] sm:$0xf]
  %v361 = vld [vmem:[%s5 + $0x5c] sm:$0xf]
  %v362 = vld [vmem:[%s5 + $0x60] sm:$0xf]
  %v363 = vld [vmem:[%s5 + $0x64] sm:$0xf]
  %v364 = vld [vmem:[%s5 + $0x68] sm:$0xf]
  %v365 = vld [vmem:[%s5 + $0x6c] sm:$0xf]
  %v366 = vld [vmem:[%s5 + $0x70] sm:$0xf]
  %v367 = vld [vmem:[%s5 + $0x74] sm:$0xf]
  %v368 = vld [vmem:[%s5 + $0x78] sm:$0xf]
  %v369 = vld [vmem:[%s5 + $0x7c] sm:$0xf]
  %v402 = vunpack.c.l.b16 %v338
  %v403 = vunpack.c.l.b16 %v339
  %v404 = vunpack.c.l.b16 %v340
  %v405 = vunpack.c.l.b16 %v341
  %v406 = vunpack.c.l.b16 %v342
  %v407 = vunpack.c.l.b16 %v343
  %v408 = vunpack.c.l.b16 %v344
  %v409 = vunpack.c.l.b16 %v345
  %v410 = vunpack.c.l.b16 %v346
  %v411 = vunpack.c.l.b16 %v347
  %v412 = vunpack.c.l.b16 %v348
  %v413 = vunpack.c.l.b16 %v349
  %v414 = vunpack.c.l.b16 %v350
  %v415 = vunpack.c.l.b16 %v351
  %v416 = vunpack.c.l.b16 %v352
  %v417 = vunpack.c.l.b16 %v353
  %v418 = vunpack.c.l.b16 %v354
  %v419 = vunpack.c.l.b16 %v355
  %v420 = vunpack.c.l.b16 %v356
  %v421 = vunpack.c.l.b16 %v357
  %v422 = vunpack.c.l.b16 %v358
  %v423 = vunpack.c.l.b16 %v359
  %v424 = vunpack.c.l.b16 %v360
  %v425 = vunpack.c.l.b16 %v361
  %v426 = vunpack.c.l.b16 %v362
  %v427 = vunpack.c.l.b16 %v363
  %v428 = vunpack.c.l.b16 %v364
  %v429 = vunpack.c.l.b16 %v365
  %v430 = vunpack.c.l.b16 %v366
  %v431 = vunpack.c.l.b16 %v367
  %v432 = vunpack.c.l.b16 %v368
  %v433 = vunpack.c.l.b16 %v369
  %v434 = vpack.c.b16 %v403, %v402
  %v435 = vpack.c.b16 %v405, %v404
  %v436 = vpack.c.b16 %v407, %v406
  %v437 = vpack.c.b16 %v409, %v408
  %v438 = vpack.c.b16 %v411, %v410
  %v439 = vpack.c.b16 %v413, %v412
  %v440 = vpack.c.b16 %v415, %v414
  %v441 = vpack.c.b16 %v417, %v416
  %v442 = vpack.c.b16 %v419, %v418
  %v443 = vpack.c.b16 %v421, %v420
  %v444 = vpack.c.b16 %v423, %v422
  %v445 = vpack.c.b16 %v425, %v424
  %v446 = vpack.c.b16 %v427, %v426
  %v447 = vpack.c.b16 %v429, %v428
  %v448 = vpack.c.b16 %v431, %v430
  %v449 = vpack.c.b16 %v433, %v432
  %466 = vmatprep.subr.bf16.mxu0 0
  %467 = vmatpush1.bf16.msra.mxu0 %v434
  %468 = vmatprep.subr.bf16.mxu0 0
  %469 = vmatpush1.bf16.msra.mxu0 %v435
  %470 = vmatprep.subr.bf16.mxu0 0
  %471 = vmatpush1.bf16.msra.mxu0 %v436
  %472 = vmatprep.subr.bf16.mxu0 0
  %473 = vmatpush1.bf16.msra.mxu0 %v437
  %474 = vmatprep.subr.bf16.mxu0 0
  %475 = vmatpush1.bf16.msra.mxu0 %v438
  %476 = vmatprep.subr.bf16.mxu0 0
  %477 = vmatpush1.bf16.msra.mxu0 %v439
  %478 = vmatprep.subr.bf16.mxu0 0
  %479 = vmatpush1.bf16.msra.mxu0 %v440
  %480 = vmatprep.subr.bf16.mxu0 0
  %481 = vmatpush1.bf16.msra.mxu0 %v441
  %482 = vmatprep.subr.bf16.mxu0 0
  %483 = vmatpush1.bf16.msra.mxu0 %v442
  %484 = vmatprep.subr.bf16.mxu0 0
  %485 = vmatpush1.bf16.msra.mxu0 %v443
  %486 = vmatprep.subr.bf16.mxu0 0
  %487 = vmatpush1.bf16.msra.mxu0 %v444
  %488 = vmatprep.subr.bf16.mxu0 0
  %489 = vmatpush1.bf16.msra.mxu0 %v445
  %490 = vmatprep.subr.bf16.mxu0 0
  %491 = vmatpush1.bf16.msra.mxu0 %v446
  %492 = vmatprep.subr.bf16.mxu0 0
  %493 = vmatpush1.bf16.msra.mxu0 %v447
  %494 = vmatprep.subr.bf16.mxu0 0
  %495 = vmatpush1.bf16.msra.mxu0 %v448
  %496 = vmatprep.subr.bf16.mxu0 0
  %497 = vmatpush1.bf16.msra.mxu0 %v449
  %498 = vmatprep.mubr.bf16.mxu0 %v337
  %499 = vmatmul.mubr.bf16.gmra.mrb[0].mxu0 %v336
  %v500 = vpop.f32.mrb[0].mxu0
  %v501 = vadd.f32 0.0, %v500
  %v502 = vpop.f32.mrb[0].mxu0
  %v503 = vpop.f32.mrb[0].mxu0
  %v504 = vadd.f32 0.0, %v503
  %v505 = vpop.f32.mrb[0].mxu0
  %506 = vdwg.mxu0
  %v507 = vadd.f32 %v334, %v501
  %v508 = vadd.f32 %v335, %v504
  %509 = vst [vmem:[#allocation2] sm:$0xff] %v507
  %510 = vst [vmem:[#allocation2 + $0x8] sm:$0xff] %v508
  // Predicated region
  $region34: #{byol_forward.7} parent=0 // pred_check
    %p511 = pneg %p27
  $region35: #{byol_forward.7} parent=0 // pred_check_branch
    %513 = sbr.rel (%p511) target = $region37
  $region36: #{byol_forward.7} parent=0 // pred_region
    %v514 = vld [vmem:[#allocation2] sm:$0xff]
    %v515 = vld [vmem:[#allocation2 + $0x8] sm:$0xff]
    %v516 = vld [vmem:[%s6] sm:$0x1]
    %v518 = vlaneseq
    %v519 = vshrl.u32 %v518, 7
    %v520 = vsub.s32 0, %v519
    %v521 = vrot.slane %v516, %v520
    %v523 = vadd.f32 %v514, %v521
    %v524 = vadd.f32 %v515, %v521
    %525 = vst [vmem:[%s7] sm:$0xff] %v523
    %526 = vst [vmem:[%s7 + $0x8] sm:$0xff] %v524
  $region37: #{byol_forward.7} parent=0 // pred_fallthru
    _
  // Predicated region
  $region38: #{byol_forward.7} parent=0 // pred_check
    _
  $region39: #{byol_forward.7} parent=0 // pred_check_branch
    %528 = sbr.rel (0) target = $region41
  $region40: #{byol_forward.7} parent=0 // pred_region
    _
  $region41: #{byol_forward.7} parent=0 // pred_fallthru
    _
  // Predicated region
  $region42: #{byol_forward.7} parent=0 // pred_check
    _
  $region43: #{byol_forward.7} parent=0 // pred_check_branch
    %530 = sbr.rel (0) target = $region45
  $region44: #{byol_forward.7} parent=0 // pred_region
    _
  $region45: #{byol_forward.7} parent=0 // pred_fallthru
    _

// kernel: byol_forward.6
$region0: #{byol_forward.6}
  #allocation0 [shape = 'u32[]', space=smem, size = 0x4, offset = 0x4, fixed_abs, tag = 'smem constant byte address 0x4 - core index']
  #allocation1 [shape = 'u32[144,128]{1,0:T(1,128)}', space=vmem, size = 0x12000, scoped, tag = 'internal scratch']
  #allocation2 [shape = 'f32[16,128]{1,0:T(8,128)}', space=vmem, size = 0x2000, scoped, tag = 'scratch operand']
  %s0 = inlined_call_operand.vmem [shape: bf16[16,1024], index: 0, kind: input, shape index: {}]
  %s1 = inlined_call_operand.vmem [shape: bf16[1024,128], index: 1, kind: input, shape index: {}]
  %s2 = inlined_call_operand.vmem [shape: f32[1,128], index: 2, kind: input, shape index: {}]
  %s3 = inlined_call_operand.vmem [shape: bf16[16,128], index: 3, kind: output, shape index: {}]
  %s4 = sld [smem:[#allocation0]]
  $region30: #{byol_forward.6} parent=0
    _
  %s6 = ssub.s32 1, %s4
  %s7 = scalar_select 0, %s6, %s4
  // Predicated region
  $region2: #{byol_forward.6} parent=0 // pred_check
    _
  $region3: #{byol_forward.6} parent=0 // pred_check_branch
    %9 = sbr.rel (0) target = $region5
  $region4: #{byol_forward.6} parent=0 // pred_region
    _
  $region5: #{byol_forward.6} parent=0 // pred_fallthru
    _
  // Predicated region
  $region6: #{byol_forward.6} parent=0 // pred_check
    _
  $region7: #{byol_forward.6} parent=0 // pred_check_branch
    %11 = sbr.rel (0) target = $region9
  $region8: #{byol_forward.6} parent=0 // pred_region
    _
  $region9: #{byol_forward.6} parent=0 // pred_fallthru
    _
  // Predicated region
  $region10: #{byol_forward.6} parent=0 // pred_check
    _
  $region11: #{byol_forward.6} parent=0 // pred_check_branch
    %13 = sbr.rel (0) target = $region13
  $region12: #{byol_forward.6} parent=0 // pred_region
    _
  $region13: #{byol_forward.6} parent=0 // pred_fallthru
    _
  %p15 = scmp.eq.s32.totalorder 0, 0
  // Predicated region
  $region14: #{byol_forward.6} parent=0 // pred_check
    %p16 = pneg %p15
  $region15: #{byol_forward.6} parent=0 // pred_check_branch
    %18 = sbr.rel (%p16) target = $region17
  $region16: #{byol_forward.6} parent=0 // pred_region
    %19 = vst [vmem:[#allocation2] sm:$0xff] 0.0
    %20 = vst [vmem:[#allocation2 + $0x8] sm:$0xff] 0.0
  $region17: #{byol_forward.6} parent=0 // pred_fallthru
    _
  %v21 = vld [vmem:[#allocation2] sm:$0xff]
  %v22 = vld [vmem:[#allocation2 + $0x8] sm:$0xff]
  %v23 = vld [vmem:[%s0] sm:$0xff]
  %v24 = vld [vmem:[%s0 + $0x8] sm:$0xff]
  %v25 = vld [vmem:[%s0 + $0x10] sm:$0xff]
  %v26 = vld [vmem:[%s0 + $0x18] sm:$0xff]
  %v27 = vld [vmem:[%s0 + $0x20] sm:$0xff]
  %v28 = vld [vmem:[%s0 + $0x28] sm:$0xff]
  %v29 = vld [vmem:[%s0 + $0x30] sm:$0xff]
  %v30 = vld [vmem:[%s0 + $0x38] sm:$0xff]
  %v31 = vld [vmem:[%s1] sm:$0xf]
  %v32 = vld [vmem:[%s1 + $0x4] sm:$0xf]
  %v33 = vld [vmem:[%s1 + $0x8] sm:$0xf]
  %v34 = vld [vmem:[%s1 + $0xc] sm:$0xf]
  %v35 = vld [vmem:[%s1 + $0x10] sm:$0xf]
  %v36 = vld [vmem:[%s1 + $0x14] sm:$0xf]
  %v37 = vld [vmem:[%s1 + $0x18] sm:$0xf]
  %v38 = vld [vmem:[%s1 + $0x1c] sm:$0xf]
  %v39 = vld [vmem:[%s1 + $0x20] sm:$0xf]
  %v40 = vld [vmem:[%s1 + $0x24] sm:$0xf]
  %v41 = vld [vmem:[%s1 + $0x28] sm:$0xf]
  %v42 = vld [vmem:[%s1 + $0x2c] sm:$0xf]
  %v43 = vld [vmem:[%s1 + $0x30] sm:$0xf]
  %v44 = vld [vmem:[%s1 + $0x34] sm:$0xf]
  %v45 = vld [vmem:[%s1 + $0x38] sm:$0xf]
  %v46 = vld [vmem:[%s1 + $0x3c] sm:$0xf]
  %v47 = vld [vmem:[%s1 + $0x40] sm:$0xf]
  %v48 = vld [vmem:[%s1 + $0x44] sm:$0xf]
  %v49 = vld [vmem:[%s1 + $0x48] sm:$0xf]
  %v50 = vld [vmem:[%s1 + $0x4c] sm:$0xf]
  %v51 = vld [vmem:[%s1 + $0x50] sm:$0xf]
  %v52 = vld [vmem:[%s1 + $0x54] sm:$0xf]
  %v53 = vld [vmem:[%s1 + $0x58] sm:$0xf]
  %v54 = vld [vmem:[%s1 + $0x5c] sm:$0xf]
  %v55 = vld [vmem:[%s1 + $0x60] sm:$0xf]
  %v56 = vld [vmem:[%s1 + $0x64] sm:$0xf]
  %v57 = vld [vmem:[%s1 + $0x68] sm:$0xf]
  %v58 = vld [vmem:[%s1 + $0x6c] sm:$0xf]
  %v59 = vld [vmem:[%s1 + $0x70] sm:$0xf]
  %v60 = vld [vmem:[%s1 + $0x74] sm:$0xf]
  %v61 = vld [vmem:[%s1 + $0x78] sm:$0xf]
  %v62 = vld [vmem:[%s1 + $0x7c] sm:$0xf]
  %v63 = vld [vmem:[%s1 + $0x80] sm:$0xf]
  %v64 = vld [vmem:[%s1 + $0x84] sm:$0xf]
  %v65 = vld [vmem:[%s1 + $0x88] sm:$0xf]
  %v66 = vld [vmem:[%s1 + $0x8c] sm:$0xf]
  %v67 = vld [vmem:[%s1 + $0x90] sm:$0xf]
  %v68 = vld [vmem:[%s1 + $0x94] sm:$0xf]
  %v69 = vld [vmem:[%s1 + $0x98] sm:$0xf]
  %v70 = vld [vmem:[%s1 + $0x9c] sm:$0xf]
  %v71 = vld [vmem:[%s1 + $0xa0] sm:$0xf]
  %v72 = vld [vmem:[%s1 + $0xa4] sm:$0xf]
  %v73 = vld [vmem:[%s1 + $0xa8] sm:$0xf]
  %v74 = vld [vmem:[%s1 + $0xac] sm:$0xf]
  %v75 = vld [vmem:[%s1 + $0xb0] sm:$0xf]
  %v76 = vld [vmem:[%s1 + $0xb4] sm:$0xf]
  %v77 = vld [vmem:[%s1 + $0xb8] sm:$0xf]
  %v78 = vld [vmem:[%s1 + $0xbc] sm:$0xf]
  %v79 = vld [vmem:[%s1 + $0xc0] sm:$0xf]
  %v80 = vld [vmem:[%s1 + $0xc4] sm:$0xf]
  %v81 = vld [vmem:[%s1 + $0xc8] sm:$0xf]
  %v82 = vld [vmem:[%s1 + $0xcc] sm:$0xf]
  %v83 = vld [vmem:[%s1 + $0xd0] sm:$0xf]
  %v84 = vld [vmem:[%s1 + $0xd4] sm:$0xf]
  %v85 = vld [vmem:[%s1 + $0xd8] sm:$0xf]
  %v86 = vld [vmem:[%s1 + $0xdc] sm:$0xf]
  %v87 = vld [vmem:[%s1 + $0xe0] sm:$0xf]
  %v88 = vld [vmem:[%s1 + $0xe4] sm:$0xf]
  %v89 = vld [vmem:[%s1 + $0xe8] sm:$0xf]
  %v90 = vld [vmem:[%s1 + $0xec] sm:$0xf]
  %v91 = vld [vmem:[%s1 + $0xf0] sm:$0xf]
  %v92 = vld [vmem:[%s1 + $0xf4] sm:$0xf]
  %v93 = vld [vmem:[%s1 + $0xf8] sm:$0xf]
  %v94 = vld [vmem:[%s1 + $0xfc] sm:$0xf]
  %v95 = vld [vmem:[%s1 + $0x100] sm:$0xf]
  %v96 = vld [vmem:[%s1 + $0x104] sm:$0xf]
  %v97 = vld [vmem:[%s1 + $0x108] sm:$0xf]
  %v98 = vld [vmem:[%s1 + $0x10c] sm:$0xf]
  %v99 = vld [vmem:[%s1 + $0x110] sm:$0xf]
  %v100 = vld [vmem:[%s1 + $0x114] sm:$0xf]
  %v101 = vld [vmem:[%s1 + $0x118] sm:$0xf]
  %v102 = vld [vmem:[%s1 + $0x11c] sm:$0xf]
  %v103 = vld [vmem:[%s1 + $0x120] sm:$0xf]
  %v104 = vld [vmem:[%s1 + $0x124] sm:$0xf]
  %v105 = vld [vmem:[%s1 + $0x128] sm:$0xf]
  %v106 = vld [vmem:[%s1 + $0x12c] sm:$0xf]
  %v107 = vld [vmem:[%s1 + $0x130] sm:$0xf]
  %v108 = vld [vmem:[%s1 + $0x134] sm:$0xf]
  %v109 = vld [vmem:[%s1 + $0x138] sm:$0xf]
  %v110 = vld [vmem:[%s1 + $0x13c] sm:$0xf]
  %v111 = vld [vmem:[%s1 + $0x140] sm:$0xf]
  %v112 = vld [vmem:[%s1 + $0x144] sm:$0xf]
  %v113 = vld [vmem:[%s1 + $0x148] sm:$0xf]
  %v114 = vld [vmem:[%s1 + $0x14c] sm:$0xf]
  %v115 = vld [vmem:[%s1 + $0x150] sm:$0xf]
  %v116 = vld [vmem:[%s1 + $0x154] sm:$0xf]
  %v117 = vld [vmem:[%s1 + $0x158] sm:$0xf]
  %v118 = vld [vmem:[%s1 + $0x15c] sm:$0xf]
  %v119 = vld [vmem:[%s1 + $0x160] sm:$0xf]
  %v120 = vld [vmem:[%s1 + $0x164] sm:$0xf]
  %v121 = vld [vmem:[%s1 + $0x168] sm:$0xf]
  %v122 = vld [vmem:[%s1 + $0x16c] sm:$0xf]
  %v123 = vld [vmem:[%s1 + $0x170] sm:$0xf]
  %v124 = vld [vmem:[%s1 + $0x174] sm:$0xf]
  %v125 = vld [vmem:[%s1 + $0x178] sm:$0xf]
  %v126 = vld [vmem:[%s1 + $0x17c] sm:$0xf]
  %v127 = vld [vmem:[%s1 + $0x180] sm:$0xf]
  %v128 = vld [vmem:[%s1 + $0x184] sm:$0xf]
  %v129 = vld [vmem:[%s1 + $0x188] sm:$0xf]
  %v130 = vld [vmem:[%s1 + $0x18c] sm:$0xf]
  %v131 = vld [vmem:[%s1 + $0x190] sm:$0xf]
  %v132 = vld [vmem:[%s1 + $0x194] sm:$0xf]
  %v133 = vld [vmem:[%s1 + $0x198] sm:$0xf]
  %v134 = vld [vmem:[%s1 + $0x19c] sm:$0xf]
  %v135 = vld [vmem:[%s1 + $0x1a0] sm:$0xf]
  %v136 = vld [vmem:[%s1 + $0x1a4] sm:$0xf]
  %v137 = vld [vmem:[%s1 + $0x1a8] sm:$0xf]
  %v138 = vld [vmem:[%s1 + $0x1ac] sm:$0xf]
  %v139 = vld [vmem:[%s1 + $0x1b0] sm:$0xf]
  %v140 = vld [vmem:[%s1 + $0x1b4] sm:$0xf]
  %v141 = vld [vmem:[%s1 + $0x1b8] sm:$0xf]
  %v142 = vld [vmem:[%s1 + $0x1bc] sm:$0xf]
  %v143 = vld [vmem:[%s1 + $0x1c0] sm:$0xf]
  %v144 = vld [vmem:[%s1 + $0x1c4] sm:$0xf]
  %v145 = vld [vmem:[%s1 + $0x1c8] sm:$0xf]
  %v146 = vld [vmem:[%s1 + $0x1cc] sm:$0xf]
  %v147 = vld [vmem:[%s1 + $0x1d0] sm:$0xf]
  %v148 = vld [vmem:[%s1 + $0x1d4] sm:$0xf]
  %v149 = vld [vmem:[%s1 + $0x1d8] sm:$0xf]
  %v150 = vld [vmem:[%s1 + $0x1dc] sm:$0xf]
  %v151 = vld [vmem:[%s1 + $0x1e0] sm:$0xf]
  %v152 = vld [vmem:[%s1 + $0x1e4] sm:$0xf]
  %v153 = vld [vmem:[%s1 + $0x1e8] sm:$0xf]
  %v154 = vld [vmem:[%s1 + $0x1ec] sm:$0xf]
  %v155 = vld [vmem:[%s1 + $0x1f0] sm:$0xf]
  %v156 = vld [vmem:[%s1 + $0x1f4] sm:$0xf]
  %v157 = vld [vmem:[%s1 + $0x1f8] sm:$0xf]
  %v158 = vld [vmem:[%s1 + $0x1fc] sm:$0xf]
  %v167 = vunpack.c.l.b16 %v23
  %v168 = vunpack.c.h.b16 %v23
  %v169 = vunpack.c.l.b16 %v24
  %v170 = vunpack.c.h.b16 %v24
  %v171 = vunpack.c.l.b16 %v25
  %v172 = vunpack.c.h.b16 %v25
  %v173 = vunpack.c.l.b16 %v26
  %v174 = vunpack.c.h.b16 %v26
  %v175 = vunpack.c.l.b16 %v27
  %v176 = vunpack.c.h.b16 %v27
  %v177 = vunpack.c.l.b16 %v28
  %v178 = vunpack.c.h.b16 %v28
  %v179 = vunpack.c.l.b16 %v29
  %v180 = vunpack.c.h.b16 %v29
  %v181 = vunpack.c.l.b16 %v30
  %v182 = vunpack.c.h.b16 %v30
  %v183 = vpack.c.b16 %v175, %v167
  %v184 = vpack.c.b16 %v176, %v168
  %v185 = vpack.c.b16 %v177, %v169
  %v186 = vpack.c.b16 %v178, %v170
  %v187 = vpack.c.b16 %v179, %v171
  %v188 = vpack.c.b16 %v180, %v172
  %v189 = vpack.c.b16 %v181, %v173
  %v190 = vpack.c.b16 %v182, %v174
  %v327 = vunpack.c.l.b16 %v31
  %v328 = vunpack.c.l.b16 %v32
  %v329 = vunpack.c.l.b16 %v33
  %v330 = vunpack.c.l.b16 %v34
  %v331 = vunpack.c.l.b16 %v35
  %v332 = vunpack.c.l.b16 %v36
  %v333 = vunpack.c.l.b16 %v37
  %v334 = vunpack.c.l.b16 %v38
  %v335 = vunpack.c.l.b16 %v39
  %v336 = vunpack.c.l.b16 %v40
  %v337 = vunpack.c.l.b16 %v41
  %v338 = vunpack.c.l.b16 %v42
  %v339 = vunpack.c.l.b16 %v43
  %v340 = vunpack.c.l.b16 %v44
  %v341 = vunpack.c.l.b16 %v45
  %v342 = vunpack.c.l.b16 %v46
  %v343 = vunpack.c.l.b16 %v47
  %v344 = vunpack.c.l.b16 %v48
  %v345 = vunpack.c.l.b16 %v49
  %v346 = vunpack.c.l.b16 %v50
  %v347 = vunpack.c.l.b16 %v51
  %v348 = vunpack.c.l.b16 %v52
  %v349 = vunpack.c.l.b16 %v53
  %v350 = vunpack.c.l.b16 %v54
  %v351 = vunpack.c.l.b16 %v55
  %v352 = vunpack.c.l.b16 %v56
  %v353 = vunpack.c.l.b16 %v57
  %v354 = vunpack.c.l.b16 %v58
  %v355 = vunpack.c.l.b16 %v59
  %v356 = vunpack.c.l.b16 %v60
  %v357 = vunpack.c.l.b16 %v61
  %v358 = vunpack.c.l.b16 %v62
  %v359 = vunpack.c.l.b16 %v63
  %v360 = vunpack.c.l.b16 %v64
  %v361 = vunpack.c.l.b16 %v65
  %v362 = vunpack.c.l.b16 %v66
  %v363 = vunpack.c.l.b16 %v67
  %v364 = vunpack.c.l.b16 %v68
  %v365 = vunpack.c.l.b16 %v69
  %v366 = vunpack.c.l.b16 %v70
  %v367 = vunpack.c.l.b16 %v71
  %v368 = vunpack.c.l.b16 %v72
  %v369 = vunpack.c.l.b16 %v73
  %v370 = vunpack.c.l.b16 %v74
  %v371 = vunpack.c.l.b16 %v75
  %v372 = vunpack.c.l.b16 %v76
  %v373 = vunpack.c.l.b16 %v77
  %v374 = vunpack.c.l.b16 %v78
  %v375 = vunpack.c.l.b16 %v79
  %v376 = vunpack.c.l.b16 %v80
  %v377 = vunpack.c.l.b16 %v81
  %v378 = vunpack.c.l.b16 %v82
  %v379 = vunpack.c.l.b16 %v83
  %v380 = vunpack.c.l.b16 %v84
  %v381 = vunpack.c.l.b16 %v85
  %v382 = vunpack.c.l.b16 %v86
  %v383 = vunpack.c.l.b16 %v87
  %v384 = vunpack.c.l.b16 %v88
  %v385 = vunpack.c.l.b16 %v89
  %v386 = vunpack.c.l.b16 %v90
  %v387 = vunpack.c.l.b16 %v91
  %v388 = vunpack.c.l.b16 %v92
  %v389 = vunpack.c.l.b16 %v93
  %v390 = vunpack.c.l.b16 %v94
  %v391 = vunpack.c.l.b16 %v95
  %v392 = vunpack.c.l.b16 %v96
  %v393 = vunpack.c.l.b16 %v97
  %v394 = vunpack.c.l.b16 %v98
  %v395 = vunpack.c.l.b16 %v99
  %v396 = vunpack.c.l.b16 %v100
  %v397 = vunpack.c.l.b16 %v101
  %v398 = vunpack.c.l.b16 %v102
  %v399 = vunpack.c.l.b16 %v103
  %v400 = vunpack.c.l.b16 %v104
  %v401 = vunpack.c.l.b16 %v105
  %v402 = vunpack.c.l.b16 %v106
  %v403 = vunpack.c.l.b16 %v107
  %v404 = vunpack.c.l.b16 %v108
  %v405 = vunpack.c.l.b16 %v109
  %v406 = vunpack.c.l.b16 %v110
  %v407 = vunpack.c.l.b16 %v111
  %v408 = vunpack.c.l.b16 %v112
  %v409 = vunpack.c.l.b16 %v113
  %v410 = vunpack.c.l.b16 %v114
  %v411 = vunpack.c.l.b16 %v115
  %v412 = vunpack.c.l.b16 %v116
  %v413 = vunpack.c.l.b16 %v117
  %v414 = vunpack.c.l.b16 %v118
  %v415 = vunpack.c.l.b16 %v119
  %v416 = vunpack.c.l.b16 %v120
  %v417 = vunpack.c.l.b16 %v121
  %v418 = vunpack.c.l.b16 %v122
  %v419 = vunpack.c.l.b16 %v123
  %v420 = vunpack.c.l.b16 %v124
  %v421 = vunpack.c.l.b16 %v125
  %v422 = vunpack.c.l.b16 %v126
  %v423 = vunpack.c.l.b16 %v127
  %v424 = vunpack.c.l.b16 %v128
  %v425 = vunpack.c.l.b16 %v129
  %v426 = vunpack.c.l.b16 %v130
  %v427 = vunpack.c.l.b16 %v131
  %v428 = vunpack.c.l.b16 %v132
  %v429 = vunpack.c.l.b16 %v133
  %v430 = vunpack.c.l.b16 %v134
  %v431 = vunpack.c.l.b16 %v135
  %v432 = vunpack.c.l.b16 %v136
  %v433 = vunpack.c.l.b16 %v137
  %v434 = vunpack.c.l.b16 %v138
  %v435 = vunpack.c.l.b16 %v139
  %v436 = vunpack.c.l.b16 %v140
  %v437 = vunpack.c.l.b16 %v141
  %v438 = vunpack.c.l.b16 %v142
  %v439 = vunpack.c.l.b16 %v143
  %v440 = vunpack.c.l.b16 %v144
  %v441 = vunpack.c.l.b16 %v145
  %v442 = vunpack.c.l.b16 %v146
  %v443 = vunpack.c.l.b16 %v147
  %v444 = vunpack.c.l.b16 %v148
  %v445 = vunpack.c.l.b16 %v149
  %v446 = vunpack.c.l.b16 %v150
  %v447 = vunpack.c.l.b16 %v151
  %v448 = vunpack.c.l.b16 %v152
  %v449 = vunpack.c.l.b16 %v153
  %v450 = vunpack.c.l.b16 %v154
  %v451 = vunpack.c.l.b16 %v155
  %v452 = vunpack.c.l.b16 %v156
  %v453 = vunpack.c.l.b16 %v157
  %v454 = vunpack.c.l.b16 %v158
  %v455 = vpack.c.b16 %v328, %v327
  %v456 = vpack.c.b16 %v330, %v329
  %v457 = vpack.c.b16 %v332, %v331
  %v458 = vpack.c.b16 %v334, %v333
  %v459 = vpack.c.b16 %v336, %v335
  %v460 = vpack.c.b16 %v338, %v337
  %v461 = vpack.c.b16 %v340, %v339
  %v462 = vpack.c.b16 %v342, %v341
  %v463 = vpack.c.b16 %v344, %v343
  %v464 = vpack.c.b16 %v346, %v345
  %v465 = vpack.c.b16 %v348, %v347
  %v466 = vpack.c.b16 %v350, %v349
  %v467 = vpack.c.b16 %v352, %v351
  %v468 = vpack.c.b16 %v354, %v353
  %v469 = vpack.c.b16 %v356, %v355
  %v470 = vpack.c.b16 %v358, %v357
  %v471 = vpack.c.b16 %v360, %v359
  %v472 = vpack.c.b16 %v362, %v361
  %v473 = vpack.c.b16 %v364, %v363
  %v474 = vpack.c.b16 %v366, %v365
  %v475 = vpack.c.b16 %v368, %v367
  %v476 = vpack.c.b16 %v370, %v369
  %v477 = vpack.c.b16 %v372, %v371
  %v478 = vpack.c.b16 %v374, %v373
  %v479 = vpack.c.b16 %v376, %v375
  %v480 = vpack.c.b16 %v378, %v377
  %v481 = vpack.c.b16 %v380, %v379
  %v482 = vpack.c.b16 %v382, %v381
  %v483 = vpack.c.b16 %v384, %v383
  %v484 = vpack.c.b16 %v386, %v385
  %v485 = vpack.c.b16 %v388, %v387
  %v486 = vpack.c.b16 %v390, %v389
  %v487 = vpack.c.b16 %v392, %v391
  %v488 = vpack.c.b16 %v394, %v393
  %v489 = vpack.c.b16 %v396, %v395
  %v490 = vpack.c.b16 %v398, %v397
  %v491 = vpack.c.b16 %v400, %v399
  %v492 = vpack.c.b16 %v402, %v401
  %v493 = vpack.c.b16 %v404, %v403
  %v494 = vpack.c.b16 %v406, %v405
  %v495 = vpack.c.b16 %v408, %v407
  %v496 = vpack.c.b16 %v410, %v409
  %v497 = vpack.c.b16 %v412, %v411
  %v498 = vpack.c.b16 %v414, %v413
  %v499 = vpack.c.b16 %v416, %v415
  %v500 = vpack.c.b16 %v418, %v417
  %v501 = vpack.c.b16 %v420, %v419
  %v502 = vpack.c.b16 %v422, %v421
  %v503 = vpack.c.b16 %v424, %v423
  %v504 = vpack.c.b16 %v426, %v425
  %v505 = vpack.c.b16 %v428, %v427
  %v506 = vpack.c.b16 %v430, %v429
  %v507 = vpack.c.b16 %v432, %v431
  %v508 = vpack.c.b16 %v434, %v433
  %v509 = vpack.c.b16 %v436, %v435
  %v510 = vpack.c.b16 %v438, %v437
  %v511 = vpack.c.b16 %v440, %v439
  %v512 = vpack.c.b16 %v442, %v441
  %v513 = vpack.c.b16 %v444, %v443
  %v514 = vpack.c.b16 %v446, %v445
  %v515 = vpack.c.b16 %v448, %v447
  %v516 = vpack.c.b16 %v450, %v449
  %v517 = vpack.c.b16 %v452, %v451
  %v518 = vpack.c.b16 %v454, %v453
  %583 = vmatprep.subr.bf16.mxu0 0
  %584 = vmatpush1.bf16.msra.mxu0 %v455
  %585 = vmatprep.subr.bf16.mxu0 0
  %586 = vmatpush1.bf16.msra.mxu0 %v456
  %587 = vmatprep.subr.bf16.mxu0 0
  %588 = vmatpush1.bf16.msra.mxu0 %v457
  %589 = vmatprep.subr.bf16.mxu0 0
  %590 = vmatpush1.bf16.msra.mxu0 %v458
  %591 = vmatprep.subr.bf16.mxu0 0
  %592 = vmatpush1.bf16.msra.mxu0 %v459
  %593 = vmatprep.subr.bf16.mxu0 0
  %594 = vmatpush1.bf16.msra.mxu0 %v460
  %595 = vmatprep.subr.bf16.mxu0 0
  %596 = vmatpush1.bf16.msra.mxu0 %v461
  %597 = vmatprep.subr.bf16.mxu0 0
  %598 = vmatpush1.bf16.msra.mxu0 %v462
  %599 = vmatprep.subr.bf16.mxu0 0
  %600 = vmatpush1.bf16.msra.mxu0 %v463
  %601 = vmatprep.subr.bf16.mxu0 0
  %602 = vmatpush1.bf16.msra.mxu0 %v464
  %603 = vmatprep.subr.bf16.mxu0 0
  %604 = vmatpush1.bf16.msra.mxu0 %v465
  %605 = vmatprep.subr.bf16.mxu0 0
  %606 = vmatpush1.bf16.msra.mxu0 %v466
  %607 = vmatprep.subr.bf16.mxu0 0
  %608 = vmatpush1.bf16.msra.mxu0 %v467
  %609 = vmatprep.subr.bf16.mxu0 0
  %610 = vmatpush1.bf16.msra.mxu0 %v468
  %611 = vmatprep.subr.bf16.mxu0 0
  %612 = vmatpush1.bf16.msra.mxu0 %v469
  %613 = vmatprep.subr.bf16.mxu0 0
  %614 = vmatpush1.bf16.msra.mxu0 %v470
  %615 = vmatprep.mubr.bf16.mxu0 %v184
  %616 = vmatmul.mubr.bf16.gmra.mrb[0].mxu0 %v183
  %v617 = vpop.f32.mrb[0].mxu0
  %v618 = vadd.f32 0.0, %v617
  %v619 = vpop.f32.mrb[0].mxu0
  %v620 = vpop.f32.mrb[0].mxu0
  %v621 = vadd.f32 0.0, %v620
  %v622 = vpop.f32.mrb[0].mxu0
  %623 = vdwg.mxu0
  %624 = vmatprep.subr.bf16.mxu0 0
  %625 = vmatpush1.bf16.msra.mxu0 %v471
  %626 = vmatprep.subr.bf16.mxu0 0
  %627 = vmatpush1.bf16.msra.mxu0 %v472
  %628 = vmatprep.subr.bf16.mxu0 0
  %629 = vmatpush1.bf16.msra.mxu0 %v473
  %630 = vmatprep.subr.bf16.mxu0 0
  %631 = vmatpush1.bf16.msra.mxu0 %v474
  %632 = vmatprep.subr.bf16.mxu0 0
  %633 = vmatpush1.bf16.msra.mxu0 %v475
  %634 = vmatprep.subr.bf16.mxu0 0
  %635 = vmatpush1.bf16.msra.mxu0 %v476
  %636 = vmatprep.subr.bf16.mxu0 0
  %637 = vmatpush1.bf16.msra.mxu0 %v477
  %638 = vmatprep.subr.bf16.mxu0 0
  %639 = vmatpush1.bf16.msra.mxu0 %v478
  %640 = vmatprep.subr.bf16.mxu0 0
  %641 = vmatpush1.bf16.msra.mxu0 %v479
  %642 = vmatprep.subr.bf16.mxu0 0
  %643 = vmatpush1.bf16.msra.mxu0 %v480
  %644 = vmatprep.subr.bf16.mxu0 0
  %645 = vmatpush1.bf16.msra.mxu0 %v481
  %646 = vmatprep.subr.bf16.mxu0 0
  %647 = vmatpush1.bf16.msra.mxu0 %v482
  %648 = vmatprep.subr.bf16.mxu0 0
  %649 = vmatpush1.bf16.msra.mxu0 %v483
  %650 = vmatprep.subr.bf16.mxu0 0
  %651 = vmatpush1.bf16.msra.mxu0 %v484
  %652 = vmatprep.subr.bf16.mxu0 0
  %653 = vmatpush1.bf16.msra.mxu0 %v485
  %654 = vmatprep.subr.bf16.mxu0 0
  %655 = vmatpush1.bf16.msra.mxu0 %v486
  %656 = vmatprep.mubr.bf16.mxu0 %v186
  %657 = vmatmul.mubr.bf16.gmra.mrb[0].mxu0 %v185
  %v658 = vpop.f32.mrb[0].mxu0
  %v659 = vadd.f32 %v618, %v658
  %v660 = vpop.f32.mrb[0].mxu0
  %v661 = vpop.f32.mrb[0].mxu0
  %v662 = vadd.f32 %v621, %v661
  %v663 = vpop.f32.mrb[0].mxu0
  %664 = vdwg.mxu0
  %665 = vmatprep.subr.bf16.mxu0 0
  %666 = vmatpush1.bf16.msra.mxu0 %v487
  %667 = vmatprep.subr.bf16.mxu0 0
  %668 = vmatpush1.bf16.msra.mxu0 %v488
  %669 = vmatprep.subr.bf16.mxu0 0
  %670 = vmatpush1.bf16.msra.mxu0 %v489
  %671 = vmatprep.subr.bf16.mxu0 0
  %672 = vmatpush1.bf16.msra.mxu0 %v490
  %673 = vmatprep.subr.bf16.mxu0 0
  %674 = vmatpush1.bf16.msra.mxu0 %v491
  %675 = vmatprep.subr.bf16.mxu0 0
  %676 = vmatpush1.bf16.msra.mxu0 %v492
  %677 = vmatprep.subr.bf16.mxu0 0
  %678 = vmatpush1.bf16.msra.mxu0 %v493
  %679 = vmatprep.subr.bf16.mxu0 0
  %680 = vmatpush1.bf16.msra.mxu0 %v494
  %681 = vmatprep.subr.bf16.mxu0 0
  %682 = vmatpush1.bf16.msra.mxu0 %v495
  %683 = vmatprep.subr.bf16.mxu0 0
  %684 = vmatpush1.bf16.msra.mxu0 %v496
  %685 = vmatprep.subr.bf16.mxu0 0
  %686 = vmatpush1.bf16.msra.mxu0 %v497
  %687 = vmatprep.subr.bf16.mxu0 0
  %688 = vmatpush1.bf16.msra.mxu0 %v498
  %689 = vmatprep.subr.bf16.mxu0 0
  %690 = vmatpush1.bf16.msra.mxu0 %v499
  %691 = vmatprep.subr.bf16.mxu0 0
  %692 = vmatpush1.bf16.msra.mxu0 %v500
  %693 = vmatprep.subr.bf16.mxu0 0
  %694 = vmatpush1.bf16.msra.mxu0 %v501
  %695 = vmatprep.subr.bf16.mxu0 0
  %696 = vmatpush1.bf16.msra.mxu0 %v502
  %697 = vmatprep.mubr.bf16.mxu0 %v188
  %698 = vmatmul.mubr.bf16.gmra.mrb[0].mxu0 %v187
  %v699 = vpop.f32.mrb[0].mxu0
  %v700 = vadd.f32 %v659, %v699
  %v701 = vpop.f32.mrb[0].mxu0
  %v702 = vpop.f32.mrb[0].mxu0
  %v703 = vadd.f32 %v662, %v702
  %v704 = vpop.f32.mrb[0].mxu0
  %705 = vdwg.mxu0
  %706 = vmatprep.subr.bf16.mxu0 0
  %707 = vmatpush1.bf16.msra.mxu0 %v503
  %708 = vmatprep.subr.bf16.mxu0 0
  %709 = vmatpush1.bf16.msra.mxu0 %v504
  %710 = vmatprep.subr.bf16.mxu0 0
  %711 = vmatpush1.bf16.msra.mxu0 %v505
  %712 = vmatprep.subr.bf16.mxu0 0
  %713 = vmatpush1.bf16.msra.mxu0 %v506
  %714 = vmatprep.subr.bf16.mxu0 0
  %715 = vmatpush1.bf16.msra.mxu0 %v507
  %716 = vmatprep.subr.bf16.mxu0 0
  %717 = vmatpush1.bf16.msra.mxu0 %v508
  %718 = vmatprep.subr.bf16.mxu0 0
  %719 = vmatpush1.bf16.msra.mxu0 %v509
  %720 = vmatprep.subr.bf16.mxu0 0
  %721 = vmatpush1.bf16.msra.mxu0 %v510
  %722 = vmatprep.subr.bf16.mxu0 0
  %723 = vmatpush1.bf16.msra.mxu0 %v511
  %724 = vmatprep.subr.bf16.mxu0 0
  %725 = vmatpush1.bf16.msra.mxu0 %v512
  %726 = vmatprep.subr.bf16.mxu0 0
  %727 = vmatpush1.bf16.msra.mxu0 %v513
  %728 = vmatprep.subr.bf16.mxu0 0
  %729 = vmatpush1.bf16.msra.mxu0 %v514
  %730 = vmatprep.subr.bf16.mxu0 0
  %731 = vmatpush1.bf16.msra.mxu0 %v515
  %732 = vmatprep.subr.bf16.mxu0 0
  %733 = vmatpush1.bf16.msra.mxu0 %v516
  %734 = vmatprep.subr.bf16.mxu0 0
  %735 = vmatpush1.bf16.msra.mxu0 %v517
  %736 = vmatprep.subr.bf16.mxu0 0
  %737 = vmatpush1.bf16.msra.mxu0 %v518
  %738 = vmatprep.mubr.bf16.mxu0 %v190
  %739 = vmatmul.mubr.bf16.gmra.mrb[0].mxu0 %v189
  %v740 = vpop.f32.mrb[0].mxu0
  %v741 = vadd.f32 %v700, %v740
  %v742 = vpop.f32.mrb[0].mxu0
  %v743 = vpop.f32.mrb[0].mxu0
  %v744 = vadd.f32 %v703, %v743
  %v745 = vpop.f32.mrb[0].mxu0
  %746 = vdwg.mxu0
  %v747 = vadd.f32 %v21, %v741
  %v748 = vadd.f32 %v22, %v744
  %749 = vst [vmem:[#allocation2] sm:$0xff] %v747
  %750 = vst [vmem:[#allocation2 + $0x8] sm:$0xff] %v748
  // Predicated region
  $region18: #{byol_forward.6} parent=0 // pred_check
    %p751 = pneg %p15
  $region19: #{byol_forward.6} parent=0 // pred_check_branch
    %753 = sbr.rel (%p751) target = $region21
  $region20: #{byol_forward.6} parent=0 // pred_region
    %v754 = vld [vmem:[#allocation2] sm:$0xff]
    %v755 = vld [vmem:[#allocation2 + $0x8] sm:$0xff]
    %v756 = vld [vmem:[%s2] sm:$0x1]
    %v758 = vlaneseq
    %v759 = vshrl.u32 %v758, 7
    %v760 = vsub.s32 0, %v759
    %v761 = vrot.slane %v756, %v760
    %v763 = vadd.f32 %v754, %v761
    %v764 = vadd.f32 %v755, %v761
    %v765 = vpack.c.bf16 %v764, %v763
    %v767 = vunpack.c.l.b16 %v765
    %v768 = vunpack.c.h.b16 %v765
    %v769 = vpack.c.b16 %v767, %v767
    %v770 = vpack.c.b16 %v768, %v768
    %773 = vst [vmem:[%s3] sm:$0xf] %v769
    %774 = vst [vmem:[%s3 + $0x4] sm:$0xf] %v770
  $region21: #{byol_forward.6} parent=0 // pred_fallthru
    _
  // Predicated region
  $region22: #{byol_forward.6} parent=0 // pred_check
    _
  $region23: #{byol_forward.6} parent=0 // pred_check_branch
    %776 = sbr.rel (0) target = $region25
  $region24: #{byol_forward.6} parent=0 // pred_region
    _
  $region25: #{byol_forward.6} parent=0 // pred_fallthru
    _
  // Predicated region
  $region26: #{byol_forward.6} parent=0 // pred_check
    _
  $region27: #{byol_forward.6} parent=0 // pred_check_branch
    %778 = sbr.rel (0) target = $region29
  $region28: #{byol_forward.6} parent=0 // pred_region
    _
  $region29: #{byol_forward.6} parent=0 // pred_fallthru
    _

</llo_original>
